<compile_context>
chip_gen: v5e
topology: v5e:2x2
jax: 0.10.0
libtpu: 0.0.40
codegen_flags: <defaults>
</compile_context>

<pallas_src>
import jax
import jax.numpy as jnp
from jax import lax
from jax.experimental import pallas as pl
from jax.experimental.pallas import tpu as pltpu

INPUT_DIM = 8
HIDDEN_DIM = 32
LAYER_DIM = 3
OUTPUT_DIM = 2

GATE_W = 128                       # per-gate column block (LAYER_DIM*HIDDEN padded to 128)
LHS_W = 128                        # fused LHS lane width: [h0|h1|h2|x|1|pad]
X_OFF = LAYER_DIM * HIDDEN_DIM     # 96  : lane where the raw input features start
BIAS_LANE = X_OFF + INPUT_DIM      # 104 : constant-1 lane (folds biases into the matmul)
NGATE_COL = 4 * GATE_W             # 512

# Layout assumptions (see review correctness notes): re-validate if dims change.
assert LAYER_DIM * HIDDEN_DIM <= GATE_W
assert BIAS_LANE + 1 <= LHS_W


def _class_rnn_kernel(x_ref, wg_ref, fc_ref, out_ref):
    """Wavefront LSTM stack + FC head, fully unrolled (one basic block).

    x_ref  : (S, B, LHS_W)     augmented input: lanes 0..95 zero, 96..103 = x_t,
                               lane 104 = 1.0 (bias lane), rest zero.
    wg_ref : (LHS_W, 4*GATE_W) fused gate weights, gate-major blocks [i|f|g|o];
                               inside a block layer l occupies cols [l*H,(l+1)*H);
                               i/f/o columns pre-scaled by 0.5 (sigmoid-via-tanh).
    fc_ref : (LHS_W+8, GATE_W) rows 64..95 = W_fc (cols 0..OUT-1), row 128 = b_fc.
    out_ref: (B, OUTPUT_DIM)   logits.
    """
    S, B, _ = x_ref.shape
    H = HIDDEN_DIM
    L = LAYER_DIM

    # --- Hoisted loop-invariant constants (JAX does not CSE broadcast_in_dim). ---
    lane_g = lax.broadcasted_iota(jnp.int32, (B, NGATE_COL), 1)
    is_g = jnp.logical_and(lane_g >= 2 * GATE_W, lane_g < 3 * GATE_W)
    fix_scale = jnp.where(is_g, jnp.float32(1.0), jnp.float32(0.5))   # (B, 512)
    fix_off = jnp.where(is_g, jnp.float32(0.0), jnp.float32(0.5))     # (B, 512)

    lane_h = lax.broadcasted_iota(jnp.int32, (B, LHS_W), 1)
    head_mask = [lane_h < H * (d + 1) for d in range(L - 1)]          # (B, 128) each

    wg = wg_ref[...]                                                  # (128, 512)

    # Packed per-layer state: lanes [l*H, (l+1)*H) hold layer l; lanes >= 96 stay
    # exactly zero for the whole kernel (gate pad columns are all-zero).
    h_all = jnp.zeros((B, LHS_W), jnp.float32)
    c_all = jnp.zeros((B, LHS_W), jnp.float32)

    # --- Wavefront over the (layer, time) grid: S + L - 1 anti-diagonals. -------
    for d in range(S + L - 1):                 # static unroll (10 diagonals)
        t0 = min(d, S - 1)                     # layer-0 time index (clamped on tail)
        # x_aug is zero on the h lanes and h_all is exactly zero on the x/bias
        # lanes, so one VPU add assembles the fused LHS [h0|h1|h2|x_t|1].
        lhs = h_all + x_ref[t0]                                        # (B, 128)
        gates = jnp.dot(lhs, wg, preferred_element_type=jnp.float32)   # (B, 512)
        # One EUP tanh for all gates of all layers; the affine fixup turns the
        # pre-scaled i/f/o columns into exact sigmoids and leaves g as tanh.
        act = jnp.tanh(gates) * fix_scale + fix_off
        i_g = act[:, 0 * GATE_W:1 * GATE_W]    # vreg-aligned slices: no relayouts
        f_g = act[:, 1 * GATE_W:2 * GATE_W]
        g_g = act[:, 2 * GATE_W:3 * GATE_W]
        o_g = act[:, 3 * GATE_W:4 * GATE_W]
        c_new = f_g * c_all + i_g * g_g
        h_new = o_g * jnp.tanh(c_new)
        if d < L - 1:
            # Head diagonals: layers that have not reached t=0 yet must keep their
            # zero initial state (their gate columns computed garbage).
            m = head_mask[d]
            c_all = jnp.where(m, c_new, c_all)
            h_all = jnp.where(m, h_new, h_all)
        else:
            # Tail diagonals need no masking: stale-layer lanes are never read again.
            c_all = c_new
            h_all = h_new

    # --- FC head on the top layer's final hidden state (lanes 64..95). ----------
    wfc = fc_ref[0:LHS_W, :]                   # (128, 128); only rows 64..95 non-zero
    bfc = fc_ref[LHS_W:LHS_W + 1, :]           # (1, 128)
    logits = jnp.dot(h_all, wfc, preferred_element_type=jnp.float32) + bfc
    out_ref[...] = logits[:, 0:OUTPUT_DIM]


def init_params(key):
    """PyTorch-style uniform(-1/sqrt(H), 1/sqrt(H)) init, unscaled / unpacked."""
    H = HIDDEN_DIM
    k = 1.0 / jnp.sqrt(jnp.float32(H))
    keys = jax.random.split(key, 4 * LAYER_DIM + 2)

    w_ih_layers, w_hh_layers, b_layers = [], [], []
    for l in range(LAYER_DIM):
        in_dim = INPUT_DIM if l == 0 else H
        w_ih = jax.random.uniform(keys[4 * l + 0], (4 * H, in_dim),
                                  minval=-k, maxval=k, dtype=jnp.float32)
        w_hh = jax.random.uniform(keys[4 * l + 1], (4 * H, H),
                                  minval=-k, maxval=k, dtype=jnp.float32)
        b_ih = jax.random.uniform(keys[4 * l + 2], (4 * H,),
                                  minval=-k, maxval=k, dtype=jnp.float32)
        b_hh = jax.random.uniform(keys[4 * l + 3], (4 * H,),
                                  minval=-k, maxval=k, dtype=jnp.float32)
        w_ih_layers.append(w_ih.T)               # (in_dim, 4H), PyTorch (i,f,g,o) order
        w_hh_layers.append(w_hh.T)               # (H, 4H)
        b_layers.append(b_ih + b_hh)             # (4H,)

    w_fc = jax.random.uniform(keys[-2], (OUTPUT_DIM, H),
                              minval=-k, maxval=k, dtype=jnp.float32)
    b_fc = jax.random.uniform(keys[-1], (OUTPUT_DIM,),
                              minval=-k, maxval=k, dtype=jnp.float32)

    return dict(
        w_ih0=w_ih_layers[0],                    # (INPUT_DIM, 4H)
        w_ih=jnp.stack(w_ih_layers[1:], 0),      # (L-1, H, 4H)
        w_hh=jnp.stack(w_hh_layers, 0),          # (L, H, 4H)
        b=jnp.stack(b_layers, 0),                # (L, 4H)
        w_fc=w_fc.T,                             # (H, OUT)
        b_fc=b_fc.reshape(1, OUTPUT_DIM),        # (1, OUT)
    )


def pack_for_kernel(params):
    """Build the fused wavefront weight slabs (done once, host side).

    Column layout (512 cols): gate-major blocks [i|f|g|o] of width 128; inside a
    block layer l occupies cols [l*H,(l+1)*H), cols 96..127 are zero pad.
    Row layout (128 rows = LHS lanes): rows [l*H,(l+1)*H) are fed by h_l, rows
    96..103 by the raw input features, row 104 by the constant-1 bias lane.
    NOTE: hard-codes PyTorch's (i, f, g, o) gate chunk order.
    """
    H, L = HIDDEN_DIM, LAYER_DIM
    w_ih = [params["w_ih0"]] + [params["w_ih"][l - 1] for l in range(1, L)]
    w_hh = [params["w_hh"][l] for l in range(L)]
    bias = [params["b"][l] for l in range(L)]

    wg = jnp.zeros((LHS_W, NGATE_COL), jnp.float32)

    def dest(gb, l):
        c0 = gb * GATE_W + l * H
        return slice(c0, c0 + H)

    for l in range(L):
        self_rows = slice(l * H, (l + 1) * H)            # lanes carrying h_l
        for gb in range(4):
            src = slice(gb * H, (gb + 1) * H)
            # recurrent weights: h_l -> layer-l gates
            wg = wg.at[self_rows, dest(gb, l)].set(w_hh[l][:, src])
            # input weights: x -> layer 0, h_{l-1} -> layer l
            if l == 0:
                wg = wg.at[X_OFF:X_OFF + INPUT_DIM, dest(gb, 0)].set(w_ih[0][:, src])
            else:
                below_rows = slice((l - 1) * H, l * H)
                wg = wg.at[below_rows, dest(gb, l)].set(w_ih[l][:, src])
            # bias (b_ih + b_hh) folded in via the constant-1 LHS lane
            wg = wg.at[BIAS_LANE, dest(gb, l)].set(bias[l][src])

    # Fold the 0.5 sigmoid pre-scale into the i/f/o column blocks (g stays tanh).
    col = jnp.arange(NGATE_COL)
    col_is_g = jnp.logical_and(col >= 2 * GATE_W, col < 3 * GATE_W)
    wg = wg * jnp.where(col_is_g, 1.0, 0.5)[None, :].astype(jnp.float32)

    # FC slab: rows 64..95 = W_fc (only h2 lanes contribute), row 128 = b_fc.
    fc = jnp.zeros((LHS_W + 8, GATE_W), jnp.float32)
    fc = fc.at[(L - 1) * H:L * H, 0:OUTPUT_DIM].set(params["w_fc"])
    fc = fc.at[LHS_W, 0:OUTPUT_DIM].set(params["b_fc"][0])

    return dict(w_gates=wg, w_fc_slab=fc)


def _class_rnn_forward(x, kparams):
    """x: (B, S, INPUT_DIM) float32, batch-first (PyTorch layout). Returns (B, OUT)."""
    B, S, D = x.shape
    # Augmented, time-major input rows: [0_{96} | x_t | 1 | 0_{23}].  Built under
    # jit so it fuses into a single tiny op in front of the pallas_call.
    x_t = jnp.transpose(x.astype(jnp.float32), (1, 0, 2))              # (S, B, D)
    x_aug = jnp.concatenate(
        [jnp.zeros((S, B, X_OFF), jnp.float32),
         x_t,
         jnp.ones((S, B, 1), jnp.float32),
         jnp.zeros((S, B, LHS_W - X_OFF - D - 1), jnp.float32)], axis=-1)

    vmem = pl.BlockSpec(memory_space=pltpu.MemorySpace.VMEM)
    return pl.pallas_call(
        _class_rnn_kernel,
        out_shape=jax.ShapeDtypeStruct((B, OUTPUT_DIM), jnp.float32),
        in_specs=[vmem, vmem, vmem],
        out_specs=vmem,
    )(x_aug, kparams["w_gates"], kparams["w_fc_slab"])


class_rnn_forward = jax.jit(_class_rnn_forward)


def reference_forward(x, params):
    """Pure-JAX reference (standard LSTM formulation, HIGHEST-precision matmuls)."""
    B, S, D = x.shape
    H = HIDDEN_DIM
    hi = lax.Precision.HIGHEST
    seq = jnp.transpose(x.astype(jnp.float32), (1, 0, 2))              # (S, B, D)
    for l in range(LAYER_DIM):
        w_ih = params["w_ih0"] if l == 0 else params["w_ih"][l - 1]
        w_hh = params["w_hh"][l]
        b = params["b"][l]
        h = jnp.zeros((B, H), jnp.float32)
        c = jnp.zeros((B, H), jnp.float32)
        outs = []
        for t in range(S):
            gates = (jnp.dot(seq[t], w_ih, precision=hi)
                     + jnp.dot(h, w_hh, precision=hi) + b)
            i_g = jax.nn.sigmoid(gates[:, 0:H])
            f_g = jax.nn.sigmoid(gates[:, H:2 * H])
            g_g = jnp.tanh(gates[:, 2 * H:3 * H])
            o_g = jax.nn.sigmoid(gates[:, 3 * H:4 * H])
            c = f_g * c + i_g * g_g
            h = o_g * jnp.tanh(c)
            outs.append(h)
        seq = jnp.stack(outs, 0)
    return jnp.dot(seq[-1], params["w_fc"], precision=hi) + params["b_fc"]


if __name__ == "__main__":
    key = jax.random.PRNGKey(0)
    k_param, k_x = jax.random.split(key)

    params = init_params(k_param)
    kparams = pack_for_kernel(params)            # one-time packing / fusing

    B, S = 2, 8
    x = jax.random.normal(k_x, (B, S, INPUT_DIM), dtype=jnp.float32)

    out = jax.block_until_ready(class_rnn_forward(x, kparams))
    ref = jax.block_until_ready(reference_forward(x, params))

    assert out.shape == (B, OUTPUT_DIM)
    # Tolerance tightened from 2e-3 (review); reference uses HIGHEST-precision dots.
    assert jnp.allclose(out, ref, atol=1e-3, rtol=1e-3), (out, ref)

    print("KERNEL_OK")
</pallas_src>

<mosaic_0001>
module attributes {stable_mosaic.version = 11 : i64} {
  func.func @_class_rnn_kernel(%arg0: memref<8x2x128xf32, #tpu.memory_space<vmem>>, %arg1: memref<128x512xf32, #tpu.memory_space<vmem>>, %arg2: memref<136x128xf32, #tpu.memory_space<vmem>>, %arg3: memref<2x2xf32, #tpu.memory_space<vmem>>) attributes {dimension_semantics = [], scalar_prefetch = 0 : i64, scratch_operands = 0 : i64, tpu.core_type = #tpu.core_type<tc>} {
    %0 = tpu.iota {dimensions = array<i32: 1>} : vector<2x512xi32>
    %c256_i32 = arith.constant 256 : i32
    %1 = vector.broadcast %c256_i32 : i32 to vector<2x512xi32>
    %2 = arith.cmpi sge, %0, %1 : vector<2x512xi32>
    %c384_i32 = arith.constant 384 : i32
    %3 = vector.broadcast %c384_i32 : i32 to vector<2x512xi32>
    %4 = arith.cmpi slt, %0, %3 : vector<2x512xi32>
    %5 = arith.andi %2, %4 : vector<2x512xi1>
    %cst = arith.constant 1.000000e+00 : f32
    %cst_0 = arith.constant 5.000000e-01 : f32
    %6 = vector.broadcast %cst : f32 to vector<2x512xf32>
    %7 = vector.broadcast %cst_0 : f32 to vector<2x512xf32>
    %8 = arith.select %5, %6, %7 : vector<2x512xi1>, vector<2x512xf32>
    %cst_1 = arith.constant 0.000000e+00 : f32
    %cst_2 = arith.constant 5.000000e-01 : f32
    %9 = vector.broadcast %cst_1 : f32 to vector<2x512xf32>
    %10 = vector.broadcast %cst_2 : f32 to vector<2x512xf32>
    %11 = arith.select %5, %9, %10 : vector<2x512xi1>, vector<2x512xf32>
    %12 = tpu.iota {dimensions = array<i32: 1>} : vector<2x128xi32>
    %c32_i32 = arith.constant 32 : i32
    %13 = vector.broadcast %c32_i32 : i32 to vector<2x128xi32>
    %14 = arith.cmpi slt, %12, %13 : vector<2x128xi32>
    %c64_i32 = arith.constant 64 : i32
    %15 = vector.broadcast %c64_i32 : i32 to vector<2x128xi32>
    %16 = arith.cmpi slt, %12, %15 : vector<2x128xi32>
    %c0 = arith.constant 0 : index
    %c0_3 = arith.constant 0 : index
    %17 = vector.load %arg1[%c0, %c0_3] : memref<128x512xf32, #tpu.memory_space<vmem>>, vector<128x512xf32>
    %cst_4 = arith.constant 0.000000e+00 : f32
    %18 = vector.broadcast %cst_4 : f32 to vector<2x128xf32>
    %cst_5 = arith.constant 0.000000e+00 : f32
    %19 = vector.broadcast %cst_5 : f32 to vector<2x128xf32>
    %c0_6 = arith.constant 0 : index
    %c0_7 = arith.constant 0 : index
    %c0_8 = arith.constant 0 : index
    %20 = vector.load %arg0[%c0_6, %c0_7, %c0_8] : memref<8x2x128xf32, #tpu.memory_space<vmem>>, vector<1x2x128xf32>
    %21 = vector.shape_cast %20 : vector<1x2x128xf32> to vector<2x128xf32>
    %22 = arith.addf %18, %21 : vector<2x128xf32>
    %cst_9 = arith.constant dense<0.000000e+00> : vector<2x512xf32>
    %23 = tpu.matmul %22, %17, %cst_9 {dimension_numbers = #tpu.dot_dimension_numbers<[1], [0], [0], [1], [0, 0, 1, 1], [], []>} : vector<2x128xf32>, vector<128x512xf32>, vector<2x512xf32> -> vector<2x512xf32>
    %24 = math.tanh %23 : vector<2x512xf32>
    %25 = arith.mulf %24, %8 : vector<2x512xf32>
    %26 = arith.addf %25, %11 : vector<2x512xf32>
    %27 = vector.extract_strided_slice %26 {offsets = [0, 0], sizes = [2, 128], strides = [1, 1]} : vector<2x512xf32> to vector<2x128xf32>
    %28 = vector.extract_strided_slice %26 {offsets = [0, 128], sizes = [2, 128], strides = [1, 1]} : vector<2x512xf32> to vector<2x128xf32>
    %29 = vector.extract_strided_slice %26 {offsets = [0, 256], sizes = [2, 128], strides = [1, 1]} : vector<2x512xf32> to vector<2x128xf32>
    %30 = vector.extract_strided_slice %26 {offsets = [0, 384], sizes = [2, 128], strides = [1, 1]} : vector<2x512xf32> to vector<2x128xf32>
    %31 = arith.mulf %28, %19 : vector<2x128xf32>
    %32 = arith.mulf %27, %29 : vector<2x128xf32>
    %33 = arith.addf %31, %32 : vector<2x128xf32>
    %34 = math.tanh %33 : vector<2x128xf32>
    %35 = arith.mulf %30, %34 : vector<2x128xf32>
    %36 = arith.select %14, %33, %19 : vector<2x128xi1>, vector<2x128xf32>
    %37 = arith.select %14, %35, %18 : vector<2x128xi1>, vector<2x128xf32>
    %c1 = arith.constant 1 : index
    %c0_10 = arith.constant 0 : index
    %c0_11 = arith.constant 0 : index
    %38 = vector.load %arg0[%c1, %c0_10, %c0_11] : memref<8x2x128xf32, #tpu.memory_space<vmem>>, vector<1x2x128xf32>
    %39 = vector.shape_cast %38 : vector<1x2x128xf32> to vector<2x128xf32>
    %40 = arith.addf %37, %39 : vector<2x128xf32>
    %cst_12 = arith.constant dense<0.000000e+00> : vector<2x512xf32>
    %41 = tpu.matmul %40, %17, %cst_12 {dimension_numbers = #tpu.dot_dimension_numbers<[1], [0], [0], [1], [0, 0, 1, 1], [], []>} : vector<2x128xf32>, vector<128x512xf32>, vector<2x512xf32> -> vector<2x512xf32>
    %42 = math.tanh %41 : vector<2x512xf32>
    %43 = arith.mulf %42, %8 : vector<2x512xf32>
    %44 = arith.addf %43, %11 : vector<2x512xf32>
    %45 = vector.extract_strided_slice %44 {offsets = [0, 0], sizes = [2, 128], strides = [1, 1]} : vector<2x512xf32> to vector<2x128xf32>
    %46 = vector.extract_strided_slice %44 {offsets = [0, 128], sizes = [2, 128], strides = [1, 1]} : vector<2x512xf32> to vector<2x128xf32>
    %47 = vector.extract_strided_slice %44 {offsets = [0, 256], sizes = [2, 128], strides = [1, 1]} : vector<2x512xf32> to vector<2x128xf32>
    %48 = vector.extract_strided_slice %44 {offsets = [0, 384], sizes = [2, 128], strides = [1, 1]} : vector<2x512xf32> to vector<2x128xf32>
    %49 = arith.mulf %46, %36 : vector<2x128xf32>
    %50 = arith.mulf %45, %47 : vector<2x128xf32>
    %51 = arith.addf %49, %50 : vector<2x128xf32>
    %52 = math.tanh %51 : vector<2x128xf32>
    %53 = arith.mulf %48, %52 : vector<2x128xf32>
    %54 = arith.select %16, %51, %36 : vector<2x128xi1>, vector<2x128xf32>
    %55 = arith.select %16, %53, %37 : vector<2x128xi1>, vector<2x128xf32>
    %c2 = arith.constant 2 : index
    %c0_13 = arith.constant 0 : index
    %c0_14 = arith.constant 0 : index
    %56 = vector.load %arg0[%c2, %c0_13, %c0_14] : memref<8x2x128xf32, #tpu.memory_space<vmem>>, vector<1x2x128xf32>
    %57 = vector.shape_cast %56 : vector<1x2x128xf32> to vector<2x128xf32>
    %58 = arith.addf %55, %57 : vector<2x128xf32>
    %cst_15 = arith.constant dense<0.000000e+00> : vector<2x512xf32>
    %59 = tpu.matmul %58, %17, %cst_15 {dimension_numbers = #tpu.dot_dimension_numbers<[1], [0], [0], [1], [0, 0, 1, 1], [], []>} : vector<2x128xf32>, vector<128x512xf32>, vector<2x512xf32> -> vector<2x512xf32>
    %60 = math.tanh %59 : vector<2x512xf32>
    %61 = arith.mulf %60, %8 : vector<2x512xf32>
    %62 = arith.addf %61, %11 : vector<2x512xf32>
    %63 = vector.extract_strided_slice %62 {offsets = [0, 0], sizes = [2, 128], strides = [1, 1]} : vector<2x512xf32> to vector<2x128xf32>
    %64 = vector.extract_strided_slice %62 {offsets = [0, 128], sizes = [2, 128], strides = [1, 1]} : vector<2x512xf32> to vector<2x128xf32>
    %65 = vector.extract_strided_slice %62 {offsets = [0, 256], sizes = [2, 128], strides = [1, 1]} : vector<2x512xf32> to vector<2x128xf32>
    %66 = vector.extract_strided_slice %62 {offsets = [0, 384], sizes = [2, 128], strides = [1, 1]} : vector<2x512xf32> to vector<2x128xf32>
    %67 = arith.mulf %64, %54 : vector<2x128xf32>
    %68 = arith.mulf %63, %65 : vector<2x128xf32>
    %69 = arith.addf %67, %68 : vector<2x128xf32>
    %70 = math.tanh %69 : vector<2x128xf32>
    %71 = arith.mulf %66, %70 : vector<2x128xf32>
    %c3 = arith.constant 3 : index
    %c0_16 = arith.constant 0 : index
    %c0_17 = arith.constant 0 : index
    %72 = vector.load %arg0[%c3, %c0_16, %c0_17] : memref<8x2x128xf32, #tpu.memory_space<vmem>>, vector<1x2x128xf32>
    %73 = vector.shape_cast %72 : vector<1x2x128xf32> to vector<2x128xf32>
    %74 = arith.addf %71, %73 : vector<2x128xf32>
    %cst_18 = arith.constant dense<0.000000e+00> : vector<2x512xf32>
    %75 = tpu.matmul %74, %17, %cst_18 {dimension_numbers = #tpu.dot_dimension_numbers<[1], [0], [0], [1], [0, 0, 1, 1], [], []>} : vector<2x128xf32>, vector<128x512xf32>, vector<2x512xf32> -> vector<2x512xf32>
    %76 = math.tanh %75 : vector<2x512xf32>
    %77 = arith.mulf %76, %8 : vector<2x512xf32>
    %78 = arith.addf %77, %11 : vector<2x512xf32>
    %79 = vector.extract_strided_slice %78 {offsets = [0, 0], sizes = [2, 128], strides = [1, 1]} : vector<2x512xf32> to vector<2x128xf32>
    %80 = vector.extract_strided_slice %78 {offsets = [0, 128], sizes = [2, 128], strides = [1, 1]} : vector<2x512xf32> to vector<2x128xf32>
    %81 = vector.extract_strided_slice %78 {offsets = [0, 256], sizes = [2, 128], strides = [1, 1]} : vector<2x512xf32> to vector<2x128xf32>
    %82 = vector.extract_strided_slice %78 {offsets = [0, 384], sizes = [2, 128], strides = [1, 1]} : vector<2x512xf32> to vector<2x128xf32>
    %83 = arith.mulf %80, %69 : vector<2x128xf32>
    %84 = arith.mulf %79, %81 : vector<2x128xf32>
    %85 = arith.addf %83, %84 : vector<2x128xf32>
    %86 = math.tanh %85 : vector<2x128xf32>
    %87 = arith.mulf %82, %86 : vector<2x128xf32>
    %c4 = arith.constant 4 : index
    %c0_19 = arith.constant 0 : index
    %c0_20 = arith.constant 0 : index
    %88 = vector.load %arg0[%c4, %c0_19, %c0_20] : memref<8x2x128xf32, #tpu.memory_space<vmem>>, vector<1x2x128xf32>
    %89 = vector.shape_cast %88 : vector<1x2x128xf32> to vector<2x128xf32>
    %90 = arith.addf %87, %89 : vector<2x128xf32>
    %cst_21 = arith.constant dense<0.000000e+00> : vector<2x512xf32>
    %91 = tpu.matmul %90, %17, %cst_21 {dimension_numbers = #tpu.dot_dimension_numbers<[1], [0], [0], [1], [0, 0, 1, 1], [], []>} : vector<2x128xf32>, vector<128x512xf32>, vector<2x512xf32> -> vector<2x512xf32>
    %92 = math.tanh %91 : vector<2x512xf32>
    %93 = arith.mulf %92, %8 : vector<2x512xf32>
    %94 = arith.addf %93, %11 : vector<2x512xf32>
    %95 = vector.extract_strided_slice %94 {offsets = [0, 0], sizes = [2, 128], strides = [1, 1]} : vector<2x512xf32> to vector<2x128xf32>
    %96 = vector.extract_strided_slice %94 {offsets = [0, 128], sizes = [2, 128], strides = [1, 1]} : vector<2x512xf32> to vector<2x128xf32>
    %97 = vector.extract_strided_slice %94 {offsets = [0, 256], sizes = [2, 128], strides = [1, 1]} : vector<2x512xf32> to vector<2x128xf32>
    %98 = vector.extract_strided_slice %94 {offsets = [0, 384], sizes = [2, 128], strides = [1, 1]} : vector<2x512xf32> to vector<2x128xf32>
    %99 = arith.mulf %96, %85 : vector<2x128xf32>
    %100 = arith.mulf %95, %97 : vector<2x128xf32>
    %101 = arith.addf %99, %100 : vector<2x128xf32>
    %102 = math.tanh %101 : vector<2x128xf32>
    %103 = arith.mulf %98, %102 : vector<2x128xf32>
    %c5 = arith.constant 5 : index
    %c0_22 = arith.constant 0 : index
    %c0_23 = arith.constant 0 : index
    %104 = vector.load %arg0[%c5, %c0_22, %c0_23] : memref<8x2x128xf32, #tpu.memory_space<vmem>>, vector<1x2x128xf32>
    %105 = vector.shape_cast %104 : vector<1x2x128xf32> to vector<2x128xf32>
    %106 = arith.addf %103, %105 : vector<2x128xf32>
    %cst_24 = arith.constant dense<0.000000e+00> : vector<2x512xf32>
    %107 = tpu.matmul %106, %17, %cst_24 {dimension_numbers = #tpu.dot_dimension_numbers<[1], [0], [0], [1], [0, 0, 1, 1], [], []>} : vector<2x128xf32>, vector<128x512xf32>, vector<2x512xf32> -> vector<2x512xf32>
    %108 = math.tanh %107 : vector<2x512xf32>
    %109 = arith.mulf %108, %8 : vector<2x512xf32>
    %110 = arith.addf %109, %11 : vector<2x512xf32>
    %111 = vector.extract_strided_slice %110 {offsets = [0, 0], sizes = [2, 128], strides = [1, 1]} : vector<2x512xf32> to vector<2x128xf32>
    %112 = vector.extract_strided_slice %110 {offsets = [0, 128], sizes = [2, 128], strides = [1, 1]} : vector<2x512xf32> to vector<2x128xf32>
    %113 = vector.extract_strided_slice %110 {offsets = [0, 256], sizes = [2, 128], strides = [1, 1]} : vector<2x512xf32> to vector<2x128xf32>
    %114 = vector.extract_strided_slice %110 {offsets = [0, 384], sizes = [2, 128], strides = [1, 1]} : vector<2x512xf32> to vector<2x128xf32>
    %115 = arith.mulf %112, %101 : vector<2x128xf32>
    %116 = arith.mulf %111, %113 : vector<2x128xf32>
    %117 = arith.addf %115, %116 : vector<2x128xf32>
    %118 = math.tanh %117 : vector<2x128xf32>
    %119 = arith.mulf %114, %118 : vector<2x128xf32>
    %c6 = arith.constant 6 : index
    %c0_25 = arith.constant 0 : index
    %c0_26 = arith.constant 0 : index
    %120 = vector.load %arg0[%c6, %c0_25, %c0_26] : memref<8x2x128xf32, #tpu.memory_space<vmem>>, vector<1x2x128xf32>
    %121 = vector.shape_cast %120 : vector<1x2x128xf32> to vector<2x128xf32>
    %122 = arith.addf %119, %121 : vector<2x128xf32>
    %cst_27 = arith.constant dense<0.000000e+00> : vector<2x512xf32>
    %123 = tpu.matmul %122, %17, %cst_27 {dimension_numbers = #tpu.dot_dimension_numbers<[1], [0], [0], [1], [0, 0, 1, 1], [], []>} : vector<2x128xf32>, vector<128x512xf32>, vector<2x512xf32> -> vector<2x512xf32>
    %124 = math.tanh %123 : vector<2x512xf32>
    %125 = arith.mulf %124, %8 : vector<2x512xf32>
    %126 = arith.addf %125, %11 : vector<2x512xf32>
    %127 = vector.extract_strided_slice %126 {offsets = [0, 0], sizes = [2, 128], strides = [1, 1]} : vector<2x512xf32> to vector<2x128xf32>
    %128 = vector.extract_strided_slice %126 {offsets = [0, 128], sizes = [2, 128], strides = [1, 1]} : vector<2x512xf32> to vector<2x128xf32>
    %129 = vector.extract_strided_slice %126 {offsets = [0, 256], sizes = [2, 128], strides = [1, 1]} : vector<2x512xf32> to vector<2x128xf32>
    %130 = vector.extract_strided_slice %126 {offsets = [0, 384], sizes = [2, 128], strides = [1, 1]} : vector<2x512xf32> to vector<2x128xf32>
    %131 = arith.mulf %128, %117 : vector<2x128xf32>
    %132 = arith.mulf %127, %129 : vector<2x128xf32>
    %133 = arith.addf %131, %132 : vector<2x128xf32>
    %134 = math.tanh %133 : vector<2x128xf32>
    %135 = arith.mulf %130, %134 : vector<2x128xf32>
    %c7 = arith.constant 7 : index
    %c0_28 = arith.constant 0 : index
    %c0_29 = arith.constant 0 : index
    %136 = vector.load %arg0[%c7, %c0_28, %c0_29] : memref<8x2x128xf32, #tpu.memory_space<vmem>>, vector<1x2x128xf32>
    %137 = vector.shape_cast %136 : vector<1x2x128xf32> to vector<2x128xf32>
    %138 = arith.addf %135, %137 : vector<2x128xf32>
    %cst_30 = arith.constant dense<0.000000e+00> : vector<2x512xf32>
    %139 = tpu.matmul %138, %17, %cst_30 {dimension_numbers = #tpu.dot_dimension_numbers<[1], [0], [0], [1], [0, 0, 1, 1], [], []>} : vector<2x128xf32>, vector<128x512xf32>, vector<2x512xf32> -> vector<2x512xf32>
    %140 = math.tanh %139 : vector<2x512xf32>
    %141 = arith.mulf %140, %8 : vector<2x512xf32>
    %142 = arith.addf %141, %11 : vector<2x512xf32>
    %143 = vector.extract_strided_slice %142 {offsets = [0, 0], sizes = [2, 128], strides = [1, 1]} : vector<2x512xf32> to vector<2x128xf32>
    %144 = vector.extract_strided_slice %142 {offsets = [0, 128], sizes = [2, 128], strides = [1, 1]} : vector<2x512xf32> to vector<2x128xf32>
    %145 = vector.extract_strided_slice %142 {offsets = [0, 256], sizes = [2, 128], strides = [1, 1]} : vector<2x512xf32> to vector<2x128xf32>
    %146 = vector.extract_strided_slice %142 {offsets = [0, 384], sizes = [2, 128], strides = [1, 1]} : vector<2x512xf32> to vector<2x128xf32>
    %147 = arith.mulf %144, %133 : vector<2x128xf32>
    %148 = arith.mulf %143, %145 : vector<2x128xf32>
    %149 = arith.addf %147, %148 : vector<2x128xf32>
    %150 = math.tanh %149 : vector<2x128xf32>
    %151 = arith.mulf %146, %150 : vector<2x128xf32>
    %c7_31 = arith.constant 7 : index
    %c0_32 = arith.constant 0 : index
    %c0_33 = arith.constant 0 : index
    %152 = vector.load %arg0[%c7_31, %c0_32, %c0_33] : memref<8x2x128xf32, #tpu.memory_space<vmem>>, vector<1x2x128xf32>
    %153 = vector.shape_cast %152 : vector<1x2x128xf32> to vector<2x128xf32>
    %154 = arith.addf %151, %153 : vector<2x128xf32>
    %cst_34 = arith.constant dense<0.000000e+00> : vector<2x512xf32>
    %155 = tpu.matmul %154, %17, %cst_34 {dimension_numbers = #tpu.dot_dimension_numbers<[1], [0], [0], [1], [0, 0, 1, 1], [], []>} : vector<2x128xf32>, vector<128x512xf32>, vector<2x512xf32> -> vector<2x512xf32>
    %156 = math.tanh %155 : vector<2x512xf32>
    %157 = arith.mulf %156, %8 : vector<2x512xf32>
    %158 = arith.addf %157, %11 : vector<2x512xf32>
    %159 = vector.extract_strided_slice %158 {offsets = [0, 0], sizes = [2, 128], strides = [1, 1]} : vector<2x512xf32> to vector<2x128xf32>
    %160 = vector.extract_strided_slice %158 {offsets = [0, 128], sizes = [2, 128], strides = [1, 1]} : vector<2x512xf32> to vector<2x128xf32>
    %161 = vector.extract_strided_slice %158 {offsets = [0, 256], sizes = [2, 128], strides = [1, 1]} : vector<2x512xf32> to vector<2x128xf32>
    %162 = vector.extract_strided_slice %158 {offsets = [0, 384], sizes = [2, 128], strides = [1, 1]} : vector<2x512xf32> to vector<2x128xf32>
    %163 = arith.mulf %160, %149 : vector<2x128xf32>
    %164 = arith.mulf %159, %161 : vector<2x128xf32>
    %165 = arith.addf %163, %164 : vector<2x128xf32>
    %166 = math.tanh %165 : vector<2x128xf32>
    %167 = arith.mulf %162, %166 : vector<2x128xf32>
    %c7_35 = arith.constant 7 : index
    %c0_36 = arith.constant 0 : index
    %c0_37 = arith.constant 0 : index
    %168 = vector.load %arg0[%c7_35, %c0_36, %c0_37] : memref<8x2x128xf32, #tpu.memory_space<vmem>>, vector<1x2x128xf32>
    %169 = vector.shape_cast %168 : vector<1x2x128xf32> to vector<2x128xf32>
    %170 = arith.addf %167, %169 : vector<2x128xf32>
    %cst_38 = arith.constant dense<0.000000e+00> : vector<2x512xf32>
    %171 = tpu.matmul %170, %17, %cst_38 {dimension_numbers = #tpu.dot_dimension_numbers<[1], [0], [0], [1], [0, 0, 1, 1], [], []>} : vector<2x128xf32>, vector<128x512xf32>, vector<2x512xf32> -> vector<2x512xf32>
    %172 = math.tanh %171 : vector<2x512xf32>
    %173 = arith.mulf %172, %8 : vector<2x512xf32>
    %174 = arith.addf %173, %11 : vector<2x512xf32>
    %175 = vector.extract_strided_slice %174 {offsets = [0, 0], sizes = [2, 128], strides = [1, 1]} : vector<2x512xf32> to vector<2x128xf32>
    %176 = vector.extract_strided_slice %174 {offsets = [0, 128], sizes = [2, 128], strides = [1, 1]} : vector<2x512xf32> to vector<2x128xf32>
    %177 = vector.extract_strided_slice %174 {offsets = [0, 256], sizes = [2, 128], strides = [1, 1]} : vector<2x512xf32> to vector<2x128xf32>
    %178 = vector.extract_strided_slice %174 {offsets = [0, 384], sizes = [2, 128], strides = [1, 1]} : vector<2x512xf32> to vector<2x128xf32>
    %179 = arith.mulf %176, %165 : vector<2x128xf32>
    %180 = arith.mulf %175, %177 : vector<2x128xf32>
    %181 = arith.addf %179, %180 : vector<2x128xf32>
    %182 = math.tanh %181 : vector<2x128xf32>
    %183 = arith.mulf %178, %182 : vector<2x128xf32>
    %c0_39 = arith.constant 0 : index
    %c0_40 = arith.constant 0 : index
    %184 = vector.load %arg2[%c0_39, %c0_40] : memref<136x128xf32, #tpu.memory_space<vmem>>, vector<128x128xf32>
    %c128 = arith.constant 128 : index
    %c0_41 = arith.constant 0 : index
    %185 = vector.load %arg2[%c128, %c0_41] : memref<136x128xf32, #tpu.memory_space<vmem>>, vector<1x128xf32>
    %cst_42 = arith.constant dense<0.000000e+00> : vector<2x128xf32>
    %186 = tpu.matmul %183, %184, %cst_42 {dimension_numbers = #tpu.dot_dimension_numbers<[1], [0], [0], [1], [0, 0, 1, 1], [], []>} : vector<2x128xf32>, vector<128x128xf32>, vector<2x128xf32> -> vector<2x128xf32>
    %187 = vector.broadcast %185 : vector<1x128xf32> to vector<2x128xf32>
    %188 = arith.addf %186, %187 : vector<2x128xf32>
    %189 = vector.extract_strided_slice %188 {offsets = [0, 0], sizes = [2, 2], strides = [1, 1]} : vector<2x128xf32> to vector<2x2xf32>
    %c0_43 = arith.constant 0 : index
    %c0_44 = arith.constant 0 : index
    %190 = vector.load %arg3[%c0_43, %c0_44] : memref<2x2xf32, #tpu.memory_space<vmem>>, vector<2x2xf32>
    tpu.vector_store %arg3[%c0_43, %c0_44], %189 {strides = array<i32>} : memref<2x2xf32, #tpu.memory_space<vmem>>, vector<2x2xf32>,
    return
  }
}

</mosaic_0001>

<llo_original>
// kernel: _class_rnn_forward.1
$region0: #{_class_rnn_forward.1}
  #allocation0 [shape = 'u32[]', space=smem, size = 0x4, offset = 0x4, fixed_abs, tag = 'smem constant byte address 0x4 - core index']
  #allocation1 [shape = 'u32[72,128]{1,0:T(1,128)}', space=vmem, size = 0x9000, scoped, tag = 'internal scratch']
  %s0 = inlined_call_operand.vmem [shape: f32[8,2,128], index: 0, kind: input, shape index: {}]
  %s1 = inlined_call_operand.hbm [shape: f32[128,512], index: 1, kind: input, shape index: {}]
  %s2 = inlined_call_operand.hbm [shape: f32[136,128], index: 2, kind: input, shape index: {}]
  %s3 = inlined_call_operand.hbm [shape: f32[2,2], index: 3, kind: output, shape index: {}]
  %s4 = sld [smem:[#allocation0]]
  $region30: #{_class_rnn_forward.1} parent=0
    _
  %s6 = ssub.s32 1, %s4
  %s7 = scalar_select 0, %s6, %s4
  $region1: #{_class_rnn_forward.1} parent=0
    #allocation2 [shape = 'u8[262144]{0}', space=vmem, size = 0x40000, scoped, tag = 'input window, operand 1, single buffered']
    #allocation3 [shape = 's32[1]{0}', space=sflag, size = 0x4, scoped, tag = 'scoped memory for _class_rnn_forward.1']
    #allocation4 [shape = 's32[1]{0}', space=sflag, size = 0x4, scoped, tag = 'scoped memory for _class_rnn_forward.1']
    #allocation5 [shape = 'u8[69632]{0}', space=vmem, size = 0x11000, scoped, tag = 'input window, operand 2, single buffered']
    #allocation6 [shape = 's32[1]{0}', space=sflag, size = 0x4, scoped, tag = 'scoped memory for _class_rnn_forward.1']
    #allocation7 [shape = 'u8[1024]{0}', space=vmem, size = 0x400, scoped, tag = 'output window, operand 0, single buffered']
    %8 = vsyncpa [#allocation3], 0
    %9 = vsyncpa [#allocation6], 0
    %10 = vsyncpa [#allocation4], 0
    // Predicated region
    $region2: #{_class_rnn_forward.1} parent=1 // pred_check
      _
    $region3: #{_class_rnn_forward.1} parent=1 // pred_check_branch
      %12 = sbr.rel (0) target = $region5
    $region4: #{_class_rnn_forward.1} parent=1 // pred_region
      _
    $region5: #{_class_rnn_forward.1} parent=1 // pred_fallthru
      _
    // Predicated region
    $region6: #{_class_rnn_forward.1} parent=1 // pred_check
      _
    $region7: #{_class_rnn_forward.1} parent=1 // pred_check_branch
      %14 = sbr.rel (0) target = $region9
    $region8: #{_class_rnn_forward.1} parent=1 // pred_region
      %16 = vsyncadd [#allocation3], 0
      %s17 = sshll.u32 %s1, 4
      %s18 = int_to_ptr.hbm [resolvable:$true] %s17
      %s19 = sshll.u32 [#allocation2], 4
      %s20 = int_to_ptr.vmem [resolvable:$true] %s19
      %25 = dma.hbm_to_vmem [thread:$0]  %s18, 8192, %s20, [#allocation3], 512, 512, 32
    $region9: #{_class_rnn_forward.1} parent=1 // pred_fallthru
      _
    // Predicated region
    $region10: #{_class_rnn_forward.1} parent=1 // pred_check
      _
    $region11: #{_class_rnn_forward.1} parent=1 // pred_check_branch
      %27 = sbr.rel (0) target = $region13
    $region12: #{_class_rnn_forward.1} parent=1 // pred_region
      %29 = vsyncadd [#allocation6], 0
      %s30 = sshll.u32 %s2, 4
      %s31 = int_to_ptr.hbm [resolvable:$true] %s30
      %s32 = sshll.u32 [#allocation5], 4
      %s33 = int_to_ptr.vmem [resolvable:$true] %s32
      %38 = dma.hbm_to_vmem [thread:$0]  %s31, 2176, %s33, [#allocation6], 128, 128, 8
    $region13: #{_class_rnn_forward.1} parent=1 // pred_fallthru
      _
    // Predicated region
    $region14: #{_class_rnn_forward.1} parent=1 // pred_check
      _
    $region15: #{_class_rnn_forward.1} parent=1 // pred_check_branch
      %40 = sbr.rel (0) target = $region17
    $region16: #{_class_rnn_forward.1} parent=1 // pred_region
      %42 = dma.done [#allocation3], 8192
    $region17: #{_class_rnn_forward.1} parent=1 // pred_fallthru
      _
    // Predicated region
    $region18: #{_class_rnn_forward.1} parent=1 // pred_check
      _
    $region19: #{_class_rnn_forward.1} parent=1 // pred_check_branch
      %44 = sbr.rel (0) target = $region21
    $region20: #{_class_rnn_forward.1} parent=1 // pred_region
      %46 = dma.done [#allocation6], 2176
    $region21: #{_class_rnn_forward.1} parent=1 // pred_fallthru
      _
    %v47 = vlaneseq
    %v48 = vand.u32 %v47, 127
    %v49 = vadd.s32 %v48, 128
    %v50 = vadd.s32 %v48, 256
    %v51 = vadd.s32 %v48, 384
    %vm52 = vcmp.ge.s32.totalorder %v48, 256
    %vm53 = vcmp.ge.s32.totalorder %v49, 256
    %vm54 = vcmp.ge.s32.totalorder %v50, 256
    %vm55 = vcmp.ge.s32.totalorder %v51, 256
    %vm56 = vcmp.lt.s32.totalorder %v48, 384
    %vm57 = vcmp.lt.s32.totalorder %v49, 384
    %vm58 = vcmp.lt.s32.totalorder %v50, 384
    %vm59 = vcmp.lt.s32.totalorder %v51, 384
    %vm60 = vmand %vm52, %vm56
    %vm61 = vmand %vm53, %vm57
    %vm62 = vmand %vm54, %vm58
    %vm63 = vmand %vm55, %vm59
    %v64 = vsel %vm60, 1.0, 0.5
    %v65 = vsel %vm61, 1.0, 0.5
    %v66 = vsel %vm62, 1.0, 0.5
    %v67 = vsel %vm63, 1.0, 0.5
    %v68 = vsel %vm60, 0.0, 0.5
    %v69 = vsel %vm61, 0.0, 0.5
    %v70 = vsel %vm62, 0.0, 0.5
    %v71 = vsel %vm63, 0.0, 0.5
    %vm72 = vcmp.lt.s32.totalorder %v48, 32
    %vm73 = vcmp.lt.s32.totalorder %v48, 64
    %v74 = vld [vmem:[#allocation2] sm:$0xff]
    %v75 = vld [vmem:[#allocation2 + $0x8] sm:$0xff]
    %v76 = vld [vmem:[#allocation2 + $0x10] sm:$0xff]
    %v77 = vld [vmem:[#allocation2 + $0x18] sm:$0xff]
    %v78 = vld [vmem:[#allocation2 + $0x20] sm:$0xff]
    %v79 = vld [vmem:[#allocation2 + $0x28] sm:$0xff]
    %v80 = vld [vmem:[#allocation2 + $0x30] sm:$0xff]
    %v81 = vld [vmem:[#allocation2 + $0x38] sm:$0xff]
    %v82 = vld [vmem:[#allocation2 + $0x40] sm:$0xff]
    %v83 = vld [vmem:[#allocation2 + $0x48] sm:$0xff]
    %v84 = vld [vmem:[#allocation2 + $0x50] sm:$0xff]
    %v85 = vld [vmem:[#allocation2 + $0x58] sm:$0xff]
    %v86 = vld [vmem:[#allocation2 + $0x60] sm:$0xff]
    %v87 = vld [vmem:[#allocation2 + $0x68] sm:$0xff]
    %v88 = vld [vmem:[#allocation2 + $0x70] sm:$0xff]
    %v89 = vld [vmem:[#allocation2 + $0x78] sm:$0xff]
    %v90 = vld [vmem:[#allocation2 + $0x80] sm:$0xff]
    %v91 = vld [vmem:[#allocation2 + $0x88] sm:$0xff]
    %v92 = vld [vmem:[#allocation2 + $0x90] sm:$0xff]
    %v93 = vld [vmem:[#allocation2 + $0x98] sm:$0xff]
    %v94 = vld [vmem:[#allocation2 + $0xa0] sm:$0xff]
    %v95 = vld [vmem:[#allocation2 + $0xa8] sm:$0xff]
    %v96 = vld [vmem:[#allocation2 + $0xb0] sm:$0xff]
    %v97 = vld [vmem:[#allocation2 + $0xb8] sm:$0xff]
    %v98 = vld [vmem:[#allocation2 + $0xc0] sm:$0xff]
    %v99 = vld [vmem:[#allocation2 + $0xc8] sm:$0xff]
    %v100 = vld [vmem:[#allocation2 + $0xd0] sm:$0xff]
    %v101 = vld [vmem:[#allocation2 + $0xd8] sm:$0xff]
    %v102 = vld [vmem:[#allocation2 + $0xe0] sm:$0xff]
    %v103 = vld [vmem:[#allocation2 + $0xe8] sm:$0xff]
    %v104 = vld [vmem:[#allocation2 + $0xf0] sm:$0xff]
    %v105 = vld [vmem:[#allocation2 + $0xf8] sm:$0xff]
    %v106 = vld [vmem:[#allocation2 + $0x100] sm:$0xff]
    %v107 = vld [vmem:[#allocation2 + $0x108] sm:$0xff]
    %v108 = vld [vmem:[#allocation2 + $0x110] sm:$0xff]
    %v109 = vld [vmem:[#allocation2 + $0x118] sm:$0xff]
    %v110 = vld [vmem:[#allocation2 + $0x120] sm:$0xff]
    %v111 = vld [vmem:[#allocation2 + $0x128] sm:$0xff]
    %v112 = vld [vmem:[#allocation2 + $0x130] sm:$0xff]
    %v113 = vld [vmem:[#allocation2 + $0x138] sm:$0xff]
    %v114 = vld [vmem:[#allocation2 + $0x140] sm:$0xff]
    %v115 = vld [vmem:[#allocation2 + $0x148] sm:$0xff]
    %v116 = vld [vmem:[#allocation2 + $0x150] sm:$0xff]
    %v117 = vld [vmem:[#allocation2 + $0x158] sm:$0xff]
    %v118 = vld [vmem:[#allocation2 + $0x160] sm:$0xff]
    %v119 = vld [vmem:[#allocation2 + $0x168] sm:$0xff]
    %v120 = vld [vmem:[#allocation2 + $0x170] sm:$0xff]
    %v121 = vld [vmem:[#allocation2 + $0x178] sm:$0xff]
    %v122 = vld [vmem:[#allocation2 + $0x180] sm:$0xff]
    %v123 = vld [vmem:[#allocation2 + $0x188] sm:$0xff]
    %v124 = vld [vmem:[#allocation2 + $0x190] sm:$0xff]
    %v125 = vld [vmem:[#allocation2 + $0x198] sm:$0xff]
    %v126 = vld [vmem:[#allocation2 + $0x1a0] sm:$0xff]
    %v127 = vld [vmem:[#allocation2 + $0x1a8] sm:$0xff]
    %v128 = vld [vmem:[#allocation2 + $0x1b0] sm:$0xff]
    %v129 = vld [vmem:[#allocation2 + $0x1b8] sm:$0xff]
    %v130 = vld [vmem:[#allocation2 + $0x1c0] sm:$0xff]
    %v131 = vld [vmem:[#allocation2 + $0x1c8] sm:$0xff]
    %v132 = vld [vmem:[#allocation2 + $0x1d0] sm:$0xff]
    %v133 = vld [vmem:[#allocation2 + $0x1d8] sm:$0xff]
    %v134 = vld [vmem:[#allocation2 + $0x1e0] sm:$0xff]
    %v135 = vld [vmem:[#allocation2 + $0x1e8] sm:$0xff]
    %v136 = vld [vmem:[#allocation2 + $0x1f0] sm:$0xff]
    %v137 = vld [vmem:[#allocation2 + $0x1f8] sm:$0xff]
    %v138 = vld [vmem:[%s0] sm:$0x3]
    %v139 = vadd.f32 %v138, 0.0
    %140 = vmatpush.msra.mxu0 %v134
    %141 = vmatpush.msra.mxu0 %v130
    %142 = vmatpush.msra.mxu0 %v126
    %143 = vmatpush.msra.mxu0 %v122
    %144 = vmatpush.msra.mxu0 %v118
    %145 = vmatpush.msra.mxu0 %v114
    %146 = vmatpush.msra.mxu0 %v110
    %147 = vmatpush.msra.mxu0 %v106
    %148 = vmatpush.msra.mxu0 %v102
    %149 = vmatpush.msra.mxu0 %v98
    %150 = vmatpush.msra.mxu0 %v94
    %151 = vmatpush.msra.mxu0 %v90
    %152 = vmatpush.msra.mxu0 %v86
    %153 = vmatpush.msra.mxu0 %v82
    %154 = vmatpush.msra.mxu0 %v78
    %155 = vmatpush.msra.mxu0 %v74
    %156 = vmatmul.f32.gmra.mxu0 %v139
    %v157 = vpop.f32.mrf.mxu0
    %v158 = vadd.f32 0.0, %v157
    %159 = vdwg.mxu0
    %160 = vmatpush.msra.mxu0 %v135
    %161 = vmatpush.msra.mxu0 %v131
    %162 = vmatpush.msra.mxu0 %v127
    %163 = vmatpush.msra.mxu0 %v123
    %164 = vmatpush.msra.mxu0 %v119
    %165 = vmatpush.msra.mxu0 %v115
    %166 = vmatpush.msra.mxu0 %v111
    %167 = vmatpush.msra.mxu0 %v107
    %168 = vmatpush.msra.mxu0 %v103
    %169 = vmatpush.msra.mxu0 %v99
    %170 = vmatpush.msra.mxu0 %v95
    %171 = vmatpush.msra.mxu0 %v91
    %172 = vmatpush.msra.mxu0 %v87
    %173 = vmatpush.msra.mxu0 %v83
    %174 = vmatpush.msra.mxu0 %v79
    %175 = vmatpush.msra.mxu0 %v75
    %176 = vmatmul.f32.gmra.mxu0 %v139
    %v177 = vpop.f32.mrf.mxu0
    %v178 = vadd.f32 0.0, %v177
    %179 = vdwg.mxu0
    %180 = vmatpush.msra.mxu0 %v136
    %181 = vmatpush.msra.mxu0 %v132
    %182 = vmatpush.msra.mxu0 %v128
    %183 = vmatpush.msra.mxu0 %v124
    %184 = vmatpush.msra.mxu0 %v120
    %185 = vmatpush.msra.mxu0 %v116
    %186 = vmatpush.msra.mxu0 %v112
    %187 = vmatpush.msra.mxu0 %v108
    %188 = vmatpush.msra.mxu0 %v104
    %189 = vmatpush.msra.mxu0 %v100
    %190 = vmatpush.msra.mxu0 %v96
    %191 = vmatpush.msra.mxu0 %v92
    %192 = vmatpush.msra.mxu0 %v88
    %193 = vmatpush.msra.mxu0 %v84
    %194 = vmatpush.msra.mxu0 %v80
    %195 = vmatpush.msra.mxu0 %v76
    %196 = vmatmul.f32.gmra.mxu0 %v139
    %v197 = vpop.f32.mrf.mxu0
    %v198 = vadd.f32 0.0, %v197
    %199 = vdwg.mxu0
    %200 = vmatpush.msra.mxu0 %v137
    %201 = vmatpush.msra.mxu0 %v133
    %202 = vmatpush.msra.mxu0 %v129
    %203 = vmatpush.msra.mxu0 %v125
    %204 = vmatpush.msra.mxu0 %v121
    %205 = vmatpush.msra.mxu0 %v117
    %206 = vmatpush.msra.mxu0 %v113
    %207 = vmatpush.msra.mxu0 %v109
    %208 = vmatpush.msra.mxu0 %v105
    %209 = vmatpush.msra.mxu0 %v101
    %210 = vmatpush.msra.mxu0 %v97
    %211 = vmatpush.msra.mxu0 %v93
    %212 = vmatpush.msra.mxu0 %v89
    %213 = vmatpush.msra.mxu0 %v85
    %214 = vmatpush.msra.mxu0 %v81
    %215 = vmatpush.msra.mxu0 %v77
    %216 = vmatmul.f32.gmra.mxu0 %v139
    %v217 = vpop.f32.mrf.mxu0
    %v218 = vadd.f32 0.0, %v217
    %219 = vdwg.mxu0
    %v220 = vtanh.pop %v158
    %v221 = vtanh.pop %v178
    %v222 = vtanh.pop %v198
    %v223 = vtanh.pop %v218
    %v224 = vmul.f32 %v220, %v64
    %v225 = vmul.f32 %v221, %v65
    %v226 = vmul.f32 %v222, %v66
    %v227 = vmul.f32 %v223, %v67
    %v228 = vadd.f32 %v224, %v68
    %v229 = vadd.f32 %v225, %v69
    %v230 = vadd.f32 %v226, %v70
    %v231 = vadd.f32 %v227, %v71
    %v232 = vmul.f32 %v229, 0.0
    %v233 = vmul.f32 %v228, %v230
    %v234 = vadd.f32 %v232, %v233
    %v235 = vtanh.pop %v234
    %v236 = vmul.f32 %v231, %v235
    %v237 = vsel %vm72, %v234, 0.0
    %v238 = vsel %vm72, %v236, 0.0
    %s239 = scalar_lea.vmem %s0, 2
    %v240 = vld [vmem:[%s239] sm:$0x3]
    %v241 = vadd.f32 %v238, %v240
    %242 = vmatpush.msra.mxu0 %v134
    %243 = vmatpush.msra.mxu0 %v130
    %244 = vmatpush.msra.mxu0 %v126
    %245 = vmatpush.msra.mxu0 %v122
    %246 = vmatpush.msra.mxu0 %v118
    %247 = vmatpush.msra.mxu0 %v114
    %248 = vmatpush.msra.mxu0 %v110
    %249 = vmatpush.msra.mxu0 %v106
    %250 = vmatpush.msra.mxu0 %v102
    %251 = vmatpush.msra.mxu0 %v98
    %252 = vmatpush.msra.mxu0 %v94
    %253 = vmatpush.msra.mxu0 %v90
    %254 = vmatpush.msra.mxu0 %v86
    %255 = vmatpush.msra.mxu0 %v82
    %256 = vmatpush.msra.mxu0 %v78
    %257 = vmatpush.msra.mxu0 %v74
    %258 = vmatmul.f32.gmra.mxu0 %v241
    %v259 = vpop.f32.mrf.mxu0
    %v260 = vadd.f32 0.0, %v259
    %261 = vdwg.mxu0
    %262 = vmatpush.msra.mxu0 %v135
    %263 = vmatpush.msra.mxu0 %v131
    %264 = vmatpush.msra.mxu0 %v127
    %265 = vmatpush.msra.mxu0 %v123
    %266 = vmatpush.msra.mxu0 %v119
    %267 = vmatpush.msra.mxu0 %v115
    %268 = vmatpush.msra.mxu0 %v111
    %269 = vmatpush.msra.mxu0 %v107
    %270 = vmatpush.msra.mxu0 %v103
    %271 = vmatpush.msra.mxu0 %v99
    %272 = vmatpush.msra.mxu0 %v95
    %273 = vmatpush.msra.mxu0 %v91
    %274 = vmatpush.msra.mxu0 %v87
    %275 = vmatpush.msra.mxu0 %v83
    %276 = vmatpush.msra.mxu0 %v79
    %277 = vmatpush.msra.mxu0 %v75
    %278 = vmatmul.f32.gmra.mxu0 %v241
    %v279 = vpop.f32.mrf.mxu0
    %v280 = vadd.f32 0.0, %v279
    %281 = vdwg.mxu0
    %282 = vmatpush.msra.mxu0 %v136
    %283 = vmatpush.msra.mxu0 %v132
    %284 = vmatpush.msra.mxu0 %v128
    %285 = vmatpush.msra.mxu0 %v124
    %286 = vmatpush.msra.mxu0 %v120
    %287 = vmatpush.msra.mxu0 %v116
    %288 = vmatpush.msra.mxu0 %v112
    %289 = vmatpush.msra.mxu0 %v108
    %290 = vmatpush.msra.mxu0 %v104
    %291 = vmatpush.msra.mxu0 %v100
    %292 = vmatpush.msra.mxu0 %v96
    %293 = vmatpush.msra.mxu0 %v92
    %294 = vmatpush.msra.mxu0 %v88
    %295 = vmatpush.msra.mxu0 %v84
    %296 = vmatpush.msra.mxu0 %v80
    %297 = vmatpush.msra.mxu0 %v76
    %298 = vmatmul.f32.gmra.mxu0 %v241
    %v299 = vpop.f32.mrf.mxu0
    %v300 = vadd.f32 0.0, %v299
    %301 = vdwg.mxu0
    %302 = vmatpush.msra.mxu0 %v137
    %303 = vmatpush.msra.mxu0 %v133
    %304 = vmatpush.msra.mxu0 %v129
    %305 = vmatpush.msra.mxu0 %v125
    %306 = vmatpush.msra.mxu0 %v121
    %307 = vmatpush.msra.mxu0 %v117
    %308 = vmatpush.msra.mxu0 %v113
    %309 = vmatpush.msra.mxu0 %v109
    %310 = vmatpush.msra.mxu0 %v105
    %311 = vmatpush.msra.mxu0 %v101
    %312 = vmatpush.msra.mxu0 %v97
    %313 = vmatpush.msra.mxu0 %v93
    %314 = vmatpush.msra.mxu0 %v89
    %315 = vmatpush.msra.mxu0 %v85
    %316 = vmatpush.msra.mxu0 %v81
    %317 = vmatpush.msra.mxu0 %v77
    %318 = vmatmul.f32.gmra.mxu0 %v241
    %v319 = vpop.f32.mrf.mxu0
    %v320 = vadd.f32 0.0, %v319
    %321 = vdwg.mxu0
    %v322 = vtanh.pop %v260
    %v323 = vtanh.pop %v280
    %v324 = vtanh.pop %v300
    %v325 = vtanh.pop %v320
    %v326 = vmul.f32 %v322, %v64
    %v327 = vmul.f32 %v323, %v65
    %v328 = vmul.f32 %v324, %v66
    %v329 = vmul.f32 %v325, %v67
    %v330 = vadd.f32 %v326, %v68
    %v331 = vadd.f32 %v327, %v69
    %v332 = vadd.f32 %v328, %v70
    %v333 = vadd.f32 %v329, %v71
    %v334 = vmul.f32 %v331, %v237
    %v335 = vmul.f32 %v330, %v332
    %v336 = vadd.f32 %v334, %v335
    %v337 = vtanh.pop %v336
    %v338 = vmul.f32 %v333, %v337
    %v339 = vsel %vm73, %v336, %v237
    %v340 = vsel %vm73, %v338, %v238
    %s341 = scalar_lea.vmem %s0, 4
    %v342 = vld [vmem:[%s341] sm:$0x3]
    %v343 = vadd.f32 %v340, %v342
    %344 = vmatpush.msra.mxu0 %v134
    %345 = vmatpush.msra.mxu0 %v130
    %346 = vmatpush.msra.mxu0 %v126
    %347 = vmatpush.msra.mxu0 %v122
    %348 = vmatpush.msra.mxu0 %v118
    %349 = vmatpush.msra.mxu0 %v114
    %350 = vmatpush.msra.mxu0 %v110
    %351 = vmatpush.msra.mxu0 %v106
    %352 = vmatpush.msra.mxu0 %v102
    %353 = vmatpush.msra.mxu0 %v98
    %354 = vmatpush.msra.mxu0 %v94
    %355 = vmatpush.msra.mxu0 %v90
    %356 = vmatpush.msra.mxu0 %v86
    %357 = vmatpush.msra.mxu0 %v82
    %358 = vmatpush.msra.mxu0 %v78
    %359 = vmatpush.msra.mxu0 %v74
    %360 = vmatmul.f32.gmra.mxu0 %v343
    %v361 = vpop.f32.mrf.mxu0
    %v362 = vadd.f32 0.0, %v361
    %363 = vdwg.mxu0
    %364 = vmatpush.msra.mxu0 %v135
    %365 = vmatpush.msra.mxu0 %v131
    %366 = vmatpush.msra.mxu0 %v127
    %367 = vmatpush.msra.mxu0 %v123
    %368 = vmatpush.msra.mxu0 %v119
    %369 = vmatpush.msra.mxu0 %v115
    %370 = vmatpush.msra.mxu0 %v111
    %371 = vmatpush.msra.mxu0 %v107
    %372 = vmatpush.msra.mxu0 %v103
    %373 = vmatpush.msra.mxu0 %v99
    %374 = vmatpush.msra.mxu0 %v95
    %375 = vmatpush.msra.mxu0 %v91
    %376 = vmatpush.msra.mxu0 %v87
    %377 = vmatpush.msra.mxu0 %v83
    %378 = vmatpush.msra.mxu0 %v79
    %379 = vmatpush.msra.mxu0 %v75
    %380 = vmatmul.f32.gmra.mxu0 %v343
    %v381 = vpop.f32.mrf.mxu0
    %v382 = vadd.f32 0.0, %v381
    %383 = vdwg.mxu0
    %384 = vmatpush.msra.mxu0 %v136
    %385 = vmatpush.msra.mxu0 %v132
    %386 = vmatpush.msra.mxu0 %v128
    %387 = vmatpush.msra.mxu0 %v124
    %388 = vmatpush.msra.mxu0 %v120
    %389 = vmatpush.msra.mxu0 %v116
    %390 = vmatpush.msra.mxu0 %v112
    %391 = vmatpush.msra.mxu0 %v108
    %392 = vmatpush.msra.mxu0 %v104
    %393 = vmatpush.msra.mxu0 %v100
    %394 = vmatpush.msra.mxu0 %v96
    %395 = vmatpush.msra.mxu0 %v92
    %396 = vmatpush.msra.mxu0 %v88
    %397 = vmatpush.msra.mxu0 %v84
    %398 = vmatpush.msra.mxu0 %v80
    %399 = vmatpush.msra.mxu0 %v76
    %400 = vmatmul.f32.gmra.mxu0 %v343
    %v401 = vpop.f32.mrf.mxu0
    %v402 = vadd.f32 0.0, %v401
    %403 = vdwg.mxu0
    %404 = vmatpush.msra.mxu0 %v137
    %405 = vmatpush.msra.mxu0 %v133
    %406 = vmatpush.msra.mxu0 %v129
    %407 = vmatpush.msra.mxu0 %v125
    %408 = vmatpush.msra.mxu0 %v121
    %409 = vmatpush.msra.mxu0 %v117
    %410 = vmatpush.msra.mxu0 %v113
    %411 = vmatpush.msra.mxu0 %v109
    %412 = vmatpush.msra.mxu0 %v105
    %413 = vmatpush.msra.mxu0 %v101
    %414 = vmatpush.msra.mxu0 %v97
    %415 = vmatpush.msra.mxu0 %v93
    %416 = vmatpush.msra.mxu0 %v89
    %417 = vmatpush.msra.mxu0 %v85
    %418 = vmatpush.msra.mxu0 %v81
    %419 = vmatpush.msra.mxu0 %v77
    %420 = vmatmul.f32.gmra.mxu0 %v343
    %v421 = vpop.f32.mrf.mxu0
    %v422 = vadd.f32 0.0, %v421
    %423 = vdwg.mxu0
    %v424 = vtanh.pop %v362
    %v425 = vtanh.pop %v382
    %v426 = vtanh.pop %v402
    %v427 = vtanh.pop %v422
    %v428 = vmul.f32 %v424, %v64
    %v429 = vmul.f32 %v425, %v65
    %v430 = vmul.f32 %v426, %v66
    %v431 = vmul.f32 %v427, %v67
    %v432 = vadd.f32 %v428, %v68
    %v433 = vadd.f32 %v429, %v69
    %v434 = vadd.f32 %v430, %v70
    %v435 = vadd.f32 %v431, %v71
    %v436 = vmul.f32 %v433, %v339
    %v437 = vmul.f32 %v432, %v434
    %v438 = vadd.f32 %v436, %v437
    %v439 = vtanh.pop %v438
    %v440 = vmul.f32 %v435, %v439
    %s441 = scalar_lea.vmem %s0, 6
    %v442 = vld [vmem:[%s441] sm:$0x3]
    %v443 = vadd.f32 %v440, %v442
    %444 = vmatpush.msra.mxu0 %v134
    %445 = vmatpush.msra.mxu0 %v130
    %446 = vmatpush.msra.mxu0 %v126
    %447 = vmatpush.msra.mxu0 %v122
    %448 = vmatpush.msra.mxu0 %v118
    %449 = vmatpush.msra.mxu0 %v114
    %450 = vmatpush.msra.mxu0 %v110
    %451 = vmatpush.msra.mxu0 %v106
    %452 = vmatpush.msra.mxu0 %v102
    %453 = vmatpush.msra.mxu0 %v98
    %454 = vmatpush.msra.mxu0 %v94
    %455 = vmatpush.msra.mxu0 %v90
    %456 = vmatpush.msra.mxu0 %v86
    %457 = vmatpush.msra.mxu0 %v82
    %458 = vmatpush.msra.mxu0 %v78
    %459 = vmatpush.msra.mxu0 %v74
    %460 = vmatmul.f32.gmra.mxu0 %v443
    %v461 = vpop.f32.mrf.mxu0
    %v462 = vadd.f32 0.0, %v461
    %463 = vdwg.mxu0
    %464 = vmatpush.msra.mxu0 %v135
    %465 = vmatpush.msra.mxu0 %v131
    %466 = vmatpush.msra.mxu0 %v127
    %467 = vmatpush.msra.mxu0 %v123
    %468 = vmatpush.msra.mxu0 %v119
    %469 = vmatpush.msra.mxu0 %v115
    %470 = vmatpush.msra.mxu0 %v111
    %471 = vmatpush.msra.mxu0 %v107
    %472 = vmatpush.msra.mxu0 %v103
    %473 = vmatpush.msra.mxu0 %v99
    %474 = vmatpush.msra.mxu0 %v95
    %475 = vmatpush.msra.mxu0 %v91
    %476 = vmatpush.msra.mxu0 %v87
    %477 = vmatpush.msra.mxu0 %v83
    %478 = vmatpush.msra.mxu0 %v79
    %479 = vmatpush.msra.mxu0 %v75
    %480 = vmatmul.f32.gmra.mxu0 %v443
    %v481 = vpop.f32.mrf.mxu0
    %v482 = vadd.f32 0.0, %v481
    %483 = vdwg.mxu0
    %484 = vmatpush.msra.mxu0 %v136
    %485 = vmatpush.msra.mxu0 %v132
    %486 = vmatpush.msra.mxu0 %v128
    %487 = vmatpush.msra.mxu0 %v124
    %488 = vmatpush.msra.mxu0 %v120
    %489 = vmatpush.msra.mxu0 %v116
    %490 = vmatpush.msra.mxu0 %v112
    %491 = vmatpush.msra.mxu0 %v108
    %492 = vmatpush.msra.mxu0 %v104
    %493 = vmatpush.msra.mxu0 %v100
    %494 = vmatpush.msra.mxu0 %v96
    %495 = vmatpush.msra.mxu0 %v92
    %496 = vmatpush.msra.mxu0 %v88
    %497 = vmatpush.msra.mxu0 %v84
    %498 = vmatpush.msra.mxu0 %v80
    %499 = vmatpush.msra.mxu0 %v76
    %500 = vmatmul.f32.gmra.mxu0 %v443
    %v501 = vpop.f32.mrf.mxu0
    %v502 = vadd.f32 0.0, %v501
    %503 = vdwg.mxu0
    %504 = vmatpush.msra.mxu0 %v137
    %505 = vmatpush.msra.mxu0 %v133
    %506 = vmatpush.msra.mxu0 %v129
    %507 = vmatpush.msra.mxu0 %v125
    %508 = vmatpush.msra.mxu0 %v121
    %509 = vmatpush.msra.mxu0 %v117
    %510 = vmatpush.msra.mxu0 %v113
    %511 = vmatpush.msra.mxu0 %v109
    %512 = vmatpush.msra.mxu0 %v105
    %513 = vmatpush.msra.mxu0 %v101
    %514 = vmatpush.msra.mxu0 %v97
    %515 = vmatpush.msra.mxu0 %v93
    %516 = vmatpush.msra.mxu0 %v89
    %517 = vmatpush.msra.mxu0 %v85
    %518 = vmatpush.msra.mxu0 %v81
    %519 = vmatpush.msra.mxu0 %v77
    %520 = vmatmul.f32.gmra.mxu0 %v443
    %v521 = vpop.f32.mrf.mxu0
    %v522 = vadd.f32 0.0, %v521
    %523 = vdwg.mxu0
    %v524 = vtanh.pop %v462
    %v525 = vtanh.pop %v482
    %v526 = vtanh.pop %v502
    %v527 = vtanh.pop %v522
    %v528 = vmul.f32 %v524, %v64
    %v529 = vmul.f32 %v525, %v65
    %v530 = vmul.f32 %v526, %v66
    %v531 = vmul.f32 %v527, %v67
    %v532 = vadd.f32 %v528, %v68
    %v533 = vadd.f32 %v529, %v69
    %v534 = vadd.f32 %v530, %v70
    %v535 = vadd.f32 %v531, %v71
    %v536 = vmul.f32 %v533, %v438
    %v537 = vmul.f32 %v532, %v534
    %v538 = vadd.f32 %v536, %v537
    %v539 = vtanh.pop %v538
    %v540 = vmul.f32 %v535, %v539
    %s541 = scalar_lea.vmem %s0, 8
    %v542 = vld [vmem:[%s541] sm:$0x3]
    %v543 = vadd.f32 %v540, %v542
    %544 = vmatpush.msra.mxu0 %v134
    %545 = vmatpush.msra.mxu0 %v130
    %546 = vmatpush.msra.mxu0 %v126
    %547 = vmatpush.msra.mxu0 %v122
    %548 = vmatpush.msra.mxu0 %v118
    %549 = vmatpush.msra.mxu0 %v114
    %550 = vmatpush.msra.mxu0 %v110
    %551 = vmatpush.msra.mxu0 %v106
    %552 = vmatpush.msra.mxu0 %v102
    %553 = vmatpush.msra.mxu0 %v98
    %554 = vmatpush.msra.mxu0 %v94
    %555 = vmatpush.msra.mxu0 %v90
    %556 = vmatpush.msra.mxu0 %v86
    %557 = vmatpush.msra.mxu0 %v82
    %558 = vmatpush.msra.mxu0 %v78
    %559 = vmatpush.msra.mxu0 %v74
    %560 = vmatmul.f32.gmra.mxu0 %v543
    %v561 = vpop.f32.mrf.mxu0
    %v562 = vadd.f32 0.0, %v561
    %563 = vdwg.mxu0
    %564 = vmatpush.msra.mxu0 %v135
    %565 = vmatpush.msra.mxu0 %v131
    %566 = vmatpush.msra.mxu0 %v127
    %567 = vmatpush.msra.mxu0 %v123
    %568 = vmatpush.msra.mxu0 %v119
    %569 = vmatpush.msra.mxu0 %v115
    %570 = vmatpush.msra.mxu0 %v111
    %571 = vmatpush.msra.mxu0 %v107
    %572 = vmatpush.msra.mxu0 %v103
    %573 = vmatpush.msra.mxu0 %v99
    %574 = vmatpush.msra.mxu0 %v95
    %575 = vmatpush.msra.mxu0 %v91
    %576 = vmatpush.msra.mxu0 %v87
    %577 = vmatpush.msra.mxu0 %v83
    %578 = vmatpush.msra.mxu0 %v79
    %579 = vmatpush.msra.mxu0 %v75
    %580 = vmatmul.f32.gmra.mxu0 %v543
    %v581 = vpop.f32.mrf.mxu0
    %v582 = vadd.f32 0.0, %v581
    %583 = vdwg.mxu0
    %584 = vmatpush.msra.mxu0 %v136
    %585 = vmatpush.msra.mxu0 %v132
    %586 = vmatpush.msra.mxu0 %v128
    %587 = vmatpush.msra.mxu0 %v124
    %588 = vmatpush.msra.mxu0 %v120
    %589 = vmatpush.msra.mxu0 %v116
    %590 = vmatpush.msra.mxu0 %v112
    %591 = vmatpush.msra.mxu0 %v108
    %592 = vmatpush.msra.mxu0 %v104
    %593 = vmatpush.msra.mxu0 %v100
    %594 = vmatpush.msra.mxu0 %v96
    %595 = vmatpush.msra.mxu0 %v92
    %596 = vmatpush.msra.mxu0 %v88
    %597 = vmatpush.msra.mxu0 %v84
    %598 = vmatpush.msra.mxu0 %v80
    %599 = vmatpush.msra.mxu0 %v76
    %600 = vmatmul.f32.gmra.mxu0 %v543
    %v601 = vpop.f32.mrf.mxu0
    %v602 = vadd.f32 0.0, %v601
    %603 = vdwg.mxu0
    %604 = vmatpush.msra.mxu0 %v137
    %605 = vmatpush.msra.mxu0 %v133
    %606 = vmatpush.msra.mxu0 %v129
    %607 = vmatpush.msra.mxu0 %v125
    %608 = vmatpush.msra.mxu0 %v121
    %609 = vmatpush.msra.mxu0 %v117
    %610 = vmatpush.msra.mxu0 %v113
    %611 = vmatpush.msra.mxu0 %v109
    %612 = vmatpush.msra.mxu0 %v105
    %613 = vmatpush.msra.mxu0 %v101
    %614 = vmatpush.msra.mxu0 %v97
    %615 = vmatpush.msra.mxu0 %v93
    %616 = vmatpush.msra.mxu0 %v89
    %617 = vmatpush.msra.mxu0 %v85
    %618 = vmatpush.msra.mxu0 %v81
    %619 = vmatpush.msra.mxu0 %v77
    %620 = vmatmul.f32.gmra.mxu0 %v543
    %v621 = vpop.f32.mrf.mxu0
    %v622 = vadd.f32 0.0, %v621
    %623 = vdwg.mxu0
    %v624 = vtanh.pop %v562
    %v625 = vtanh.pop %v582
    %v626 = vtanh.pop %v602
    %v627 = vtanh.pop %v622
    %v628 = vmul.f32 %v624, %v64
    %v629 = vmul.f32 %v625, %v65
    %v630 = vmul.f32 %v626, %v66
    %v631 = vmul.f32 %v627, %v67
    %v632 = vadd.f32 %v628, %v68
    %v633 = vadd.f32 %v629, %v69
    %v634 = vadd.f32 %v630, %v70
    %v635 = vadd.f32 %v631, %v71
    %v636 = vmul.f32 %v633, %v538
    %v637 = vmul.f32 %v632, %v634
    %v638 = vadd.f32 %v636, %v637
    %v639 = vtanh.pop %v638
    %v640 = vmul.f32 %v635, %v639
    %s641 = scalar_lea.vmem %s0, 10
    %v642 = vld [vmem:[%s641] sm:$0x3]
    %v643 = vadd.f32 %v640, %v642
    %644 = vmatpush.msra.mxu0 %v134
    %645 = vmatpush.msra.mxu0 %v130
    %646 = vmatpush.msra.mxu0 %v126
    %647 = vmatpush.msra.mxu0 %v122
    %648 = vmatpush.msra.mxu0 %v118
    %649 = vmatpush.msra.mxu0 %v114
    %650 = vmatpush.msra.mxu0 %v110
    %651 = vmatpush.msra.mxu0 %v106
    %652 = vmatpush.msra.mxu0 %v102
    %653 = vmatpush.msra.mxu0 %v98
    %654 = vmatpush.msra.mxu0 %v94
    %655 = vmatpush.msra.mxu0 %v90
    %656 = vmatpush.msra.mxu0 %v86
    %657 = vmatpush.msra.mxu0 %v82
    %658 = vmatpush.msra.mxu0 %v78
    %659 = vmatpush.msra.mxu0 %v74
    %660 = vmatmul.f32.gmra.mxu0 %v643
    %v661 = vpop.f32.mrf.mxu0
    %v662 = vadd.f32 0.0, %v661
    %663 = vdwg.mxu0
    %664 = vmatpush.msra.mxu0 %v135
    %665 = vmatpush.msra.mxu0 %v131
    %666 = vmatpush.msra.mxu0 %v127
    %667 = vmatpush.msra.mxu0 %v123
    %668 = vmatpush.msra.mxu0 %v119
    %669 = vmatpush.msra.mxu0 %v115
    %670 = vmatpush.msra.mxu0 %v111
    %671 = vmatpush.msra.mxu0 %v107
    %672 = vmatpush.msra.mxu0 %v103
    %673 = vmatpush.msra.mxu0 %v99
    %674 = vmatpush.msra.mxu0 %v95
    %675 = vmatpush.msra.mxu0 %v91
    %676 = vmatpush.msra.mxu0 %v87
    %677 = vmatpush.msra.mxu0 %v83
    %678 = vmatpush.msra.mxu0 %v79
    %679 = vmatpush.msra.mxu0 %v75
    %680 = vmatmul.f32.gmra.mxu0 %v643
    %v681 = vpop.f32.mrf.mxu0
    %v682 = vadd.f32 0.0, %v681
    %683 = vdwg.mxu0
    %684 = vmatpush.msra.mxu0 %v136
    %685 = vmatpush.msra.mxu0 %v132
    %686 = vmatpush.msra.mxu0 %v128
    %687 = vmatpush.msra.mxu0 %v124
    %688 = vmatpush.msra.mxu0 %v120
    %689 = vmatpush.msra.mxu0 %v116
    %690 = vmatpush.msra.mxu0 %v112
    %691 = vmatpush.msra.mxu0 %v108
    %692 = vmatpush.msra.mxu0 %v104
    %693 = vmatpush.msra.mxu0 %v100
    %694 = vmatpush.msra.mxu0 %v96
    %695 = vmatpush.msra.mxu0 %v92
    %696 = vmatpush.msra.mxu0 %v88
    %697 = vmatpush.msra.mxu0 %v84
    %698 = vmatpush.msra.mxu0 %v80
    %699 = vmatpush.msra.mxu0 %v76
    %700 = vmatmul.f32.gmra.mxu0 %v643
    %v701 = vpop.f32.mrf.mxu0
    %v702 = vadd.f32 0.0, %v701
    %703 = vdwg.mxu0
    %704 = vmatpush.msra.mxu0 %v137
    %705 = vmatpush.msra.mxu0 %v133
    %706 = vmatpush.msra.mxu0 %v129
    %707 = vmatpush.msra.mxu0 %v125
    %708 = vmatpush.msra.mxu0 %v121
    %709 = vmatpush.msra.mxu0 %v117
    %710 = vmatpush.msra.mxu0 %v113
    %711 = vmatpush.msra.mxu0 %v109
    %712 = vmatpush.msra.mxu0 %v105
    %713 = vmatpush.msra.mxu0 %v101
    %714 = vmatpush.msra.mxu0 %v97
    %715 = vmatpush.msra.mxu0 %v93
    %716 = vmatpush.msra.mxu0 %v89
    %717 = vmatpush.msra.mxu0 %v85
    %718 = vmatpush.msra.mxu0 %v81
    %719 = vmatpush.msra.mxu0 %v77
    %720 = vmatmul.f32.gmra.mxu0 %v643
    %v721 = vpop.f32.mrf.mxu0
    %v722 = vadd.f32 0.0, %v721
    %723 = vdwg.mxu0
    %v724 = vtanh.pop %v662
    %v725 = vtanh.pop %v682
    %v726 = vtanh.pop %v702
    %v727 = vtanh.pop %v722
    %v728 = vmul.f32 %v724, %v64
    %v729 = vmul.f32 %v725, %v65
    %v730 = vmul.f32 %v726, %v66
    %v731 = vmul.f32 %v727, %v67
    %v732 = vadd.f32 %v728, %v68
    %v733 = vadd.f32 %v729, %v69
    %v734 = vadd.f32 %v730, %v70
    %v735 = vadd.f32 %v731, %v71
    %v736 = vmul.f32 %v733, %v638
    %v737 = vmul.f32 %v732, %v734
    %v738 = vadd.f32 %v736, %v737
    %v739 = vtanh.pop %v738
    %v740 = vmul.f32 %v735, %v739
    %s741 = scalar_lea.vmem %s0, 12
    %v742 = vld [vmem:[%s741] sm:$0x3]
    %v743 = vadd.f32 %v740, %v742
    %744 = vmatpush.msra.mxu0 %v134
    %745 = vmatpush.msra.mxu0 %v130
    %746 = vmatpush.msra.mxu0 %v126
    %747 = vmatpush.msra.mxu0 %v122
    %748 = vmatpush.msra.mxu0 %v118
    %749 = vmatpush.msra.mxu0 %v114
    %750 = vmatpush.msra.mxu0 %v110
    %751 = vmatpush.msra.mxu0 %v106
    %752 = vmatpush.msra.mxu0 %v102
    %753 = vmatpush.msra.mxu0 %v98
    %754 = vmatpush.msra.mxu0 %v94
    %755 = vmatpush.msra.mxu0 %v90
    %756 = vmatpush.msra.mxu0 %v86
    %757 = vmatpush.msra.mxu0 %v82
    %758 = vmatpush.msra.mxu0 %v78
    %759 = vmatpush.msra.mxu0 %v74
    %760 = vmatmul.f32.gmra.mxu0 %v743
    %v761 = vpop.f32.mrf.mxu0
    %v762 = vadd.f32 0.0, %v761
    %763 = vdwg.mxu0
    %764 = vmatpush.msra.mxu0 %v135
    %765 = vmatpush.msra.mxu0 %v131
    %766 = vmatpush.msra.mxu0 %v127
    %767 = vmatpush.msra.mxu0 %v123
    %768 = vmatpush.msra.mxu0 %v119
    %769 = vmatpush.msra.mxu0 %v115
    %770 = vmatpush.msra.mxu0 %v111
    %771 = vmatpush.msra.mxu0 %v107
    %772 = vmatpush.msra.mxu0 %v103
    %773 = vmatpush.msra.mxu0 %v99
    %774 = vmatpush.msra.mxu0 %v95
    %775 = vmatpush.msra.mxu0 %v91
    %776 = vmatpush.msra.mxu0 %v87
    %777 = vmatpush.msra.mxu0 %v83
    %778 = vmatpush.msra.mxu0 %v79
    %779 = vmatpush.msra.mxu0 %v75
    %780 = vmatmul.f32.gmra.mxu0 %v743
    %v781 = vpop.f32.mrf.mxu0
    %v782 = vadd.f32 0.0, %v781
    %783 = vdwg.mxu0
    %784 = vmatpush.msra.mxu0 %v136
    %785 = vmatpush.msra.mxu0 %v132
    %786 = vmatpush.msra.mxu0 %v128
    %787 = vmatpush.msra.mxu0 %v124
    %788 = vmatpush.msra.mxu0 %v120
    %789 = vmatpush.msra.mxu0 %v116
    %790 = vmatpush.msra.mxu0 %v112
    %791 = vmatpush.msra.mxu0 %v108
    %792 = vmatpush.msra.mxu0 %v104
    %793 = vmatpush.msra.mxu0 %v100
    %794 = vmatpush.msra.mxu0 %v96
    %795 = vmatpush.msra.mxu0 %v92
    %796 = vmatpush.msra.mxu0 %v88
    %797 = vmatpush.msra.mxu0 %v84
    %798 = vmatpush.msra.mxu0 %v80
    %799 = vmatpush.msra.mxu0 %v76
    %800 = vmatmul.f32.gmra.mxu0 %v743
    %v801 = vpop.f32.mrf.mxu0
    %v802 = vadd.f32 0.0, %v801
    %803 = vdwg.mxu0
    %804 = vmatpush.msra.mxu0 %v137
    %805 = vmatpush.msra.mxu0 %v133
    %806 = vmatpush.msra.mxu0 %v129
    %807 = vmatpush.msra.mxu0 %v125
    %808 = vmatpush.msra.mxu0 %v121
    %809 = vmatpush.msra.mxu0 %v117
    %810 = vmatpush.msra.mxu0 %v113
    %811 = vmatpush.msra.mxu0 %v109
    %812 = vmatpush.msra.mxu0 %v105
    %813 = vmatpush.msra.mxu0 %v101
    %814 = vmatpush.msra.mxu0 %v97
    %815 = vmatpush.msra.mxu0 %v93
    %816 = vmatpush.msra.mxu0 %v89
    %817 = vmatpush.msra.mxu0 %v85
    %818 = vmatpush.msra.mxu0 %v81
    %819 = vmatpush.msra.mxu0 %v77
    %820 = vmatmul.f32.gmra.mxu0 %v743
    %v821 = vpop.f32.mrf.mxu0
    %v822 = vadd.f32 0.0, %v821
    %823 = vdwg.mxu0
    %v824 = vtanh.pop %v762
    %v825 = vtanh.pop %v782
    %v826 = vtanh.pop %v802
    %v827 = vtanh.pop %v822
    %v828 = vmul.f32 %v824, %v64
    %v829 = vmul.f32 %v825, %v65
    %v830 = vmul.f32 %v826, %v66
    %v831 = vmul.f32 %v827, %v67
    %v832 = vadd.f32 %v828, %v68
    %v833 = vadd.f32 %v829, %v69
    %v834 = vadd.f32 %v830, %v70
    %v835 = vadd.f32 %v831, %v71
    %v836 = vmul.f32 %v833, %v738
    %v837 = vmul.f32 %v832, %v834
    %v838 = vadd.f32 %v836, %v837
    %v839 = vtanh.pop %v838
    %v840 = vmul.f32 %v835, %v839
    %s841 = scalar_lea.vmem %s0, 14
    %v842 = vld [vmem:[%s841] sm:$0x3]
    %v843 = vadd.f32 %v840, %v842
    %844 = vmatpush.msra.mxu0 %v134
    %845 = vmatpush.msra.mxu0 %v130
    %846 = vmatpush.msra.mxu0 %v126
    %847 = vmatpush.msra.mxu0 %v122
    %848 = vmatpush.msra.mxu0 %v118
    %849 = vmatpush.msra.mxu0 %v114
    %850 = vmatpush.msra.mxu0 %v110
    %851 = vmatpush.msra.mxu0 %v106
    %852 = vmatpush.msra.mxu0 %v102
    %853 = vmatpush.msra.mxu0 %v98
    %854 = vmatpush.msra.mxu0 %v94
    %855 = vmatpush.msra.mxu0 %v90
    %856 = vmatpush.msra.mxu0 %v86
    %857 = vmatpush.msra.mxu0 %v82
    %858 = vmatpush.msra.mxu0 %v78
    %859 = vmatpush.msra.mxu0 %v74
    %860 = vmatmul.f32.gmra.mxu0 %v843
    %v861 = vpop.f32.mrf.mxu0
    %v862 = vadd.f32 0.0, %v861
    %863 = vdwg.mxu0
    %864 = vmatpush.msra.mxu0 %v135
    %865 = vmatpush.msra.mxu0 %v131
    %866 = vmatpush.msra.mxu0 %v127
    %867 = vmatpush.msra.mxu0 %v123
    %868 = vmatpush.msra.mxu0 %v119
    %869 = vmatpush.msra.mxu0 %v115
    %870 = vmatpush.msra.mxu0 %v111
    %871 = vmatpush.msra.mxu0 %v107
    %872 = vmatpush.msra.mxu0 %v103
    %873 = vmatpush.msra.mxu0 %v99
    %874 = vmatpush.msra.mxu0 %v95
    %875 = vmatpush.msra.mxu0 %v91
    %876 = vmatpush.msra.mxu0 %v87
    %877 = vmatpush.msra.mxu0 %v83
    %878 = vmatpush.msra.mxu0 %v79
    %879 = vmatpush.msra.mxu0 %v75
    %880 = vmatmul.f32.gmra.mxu0 %v843
    %v881 = vpop.f32.mrf.mxu0
    %v882 = vadd.f32 0.0, %v881
    %883 = vdwg.mxu0
    %884 = vmatpush.msra.mxu0 %v136
    %885 = vmatpush.msra.mxu0 %v132
    %886 = vmatpush.msra.mxu0 %v128
    %887 = vmatpush.msra.mxu0 %v124
    %888 = vmatpush.msra.mxu0 %v120
    %889 = vmatpush.msra.mxu0 %v116
    %890 = vmatpush.msra.mxu0 %v112
    %891 = vmatpush.msra.mxu0 %v108
    %892 = vmatpush.msra.mxu0 %v104
    %893 = vmatpush.msra.mxu0 %v100
    %894 = vmatpush.msra.mxu0 %v96
    %895 = vmatpush.msra.mxu0 %v92
    %896 = vmatpush.msra.mxu0 %v88
    %897 = vmatpush.msra.mxu0 %v84
    %898 = vmatpush.msra.mxu0 %v80
    %899 = vmatpush.msra.mxu0 %v76
    %900 = vmatmul.f32.gmra.mxu0 %v843
    %v901 = vpop.f32.mrf.mxu0
    %v902 = vadd.f32 0.0, %v901
    %903 = vdwg.mxu0
    %904 = vmatpush.msra.mxu0 %v137
    %905 = vmatpush.msra.mxu0 %v133
    %906 = vmatpush.msra.mxu0 %v129
    %907 = vmatpush.msra.mxu0 %v125
    %908 = vmatpush.msra.mxu0 %v121
    %909 = vmatpush.msra.mxu0 %v117
    %910 = vmatpush.msra.mxu0 %v113
    %911 = vmatpush.msra.mxu0 %v109
    %912 = vmatpush.msra.mxu0 %v105
    %913 = vmatpush.msra.mxu0 %v101
    %914 = vmatpush.msra.mxu0 %v97
    %915 = vmatpush.msra.mxu0 %v93
    %916 = vmatpush.msra.mxu0 %v89
    %917 = vmatpush.msra.mxu0 %v85
    %918 = vmatpush.msra.mxu0 %v81
    %919 = vmatpush.msra.mxu0 %v77
    %920 = vmatmul.f32.gmra.mxu0 %v843
    %v921 = vpop.f32.mrf.mxu0
    %v922 = vadd.f32 0.0, %v921
    %923 = vdwg.mxu0
    %v924 = vtanh.pop %v862
    %v925 = vtanh.pop %v882
    %v926 = vtanh.pop %v902
    %v927 = vtanh.pop %v922
    %v928 = vmul.f32 %v924, %v64
    %v929 = vmul.f32 %v925, %v65
    %v930 = vmul.f32 %v926, %v66
    %v931 = vmul.f32 %v927, %v67
    %v932 = vadd.f32 %v928, %v68
    %v933 = vadd.f32 %v929, %v69
    %v934 = vadd.f32 %v930, %v70
    %v935 = vadd.f32 %v931, %v71
    %v936 = vmul.f32 %v933, %v838
    %v937 = vmul.f32 %v932, %v934
    %v938 = vadd.f32 %v936, %v937
    %v939 = vtanh.pop %v938
    %v940 = vmul.f32 %v935, %v939
    %v941 = vadd.f32 %v940, %v842
    %942 = vmatpush.msra.mxu0 %v134
    %943 = vmatpush.msra.mxu0 %v130
    %944 = vmatpush.msra.mxu0 %v126
    %945 = vmatpush.msra.mxu0 %v122
    %946 = vmatpush.msra.mxu0 %v118
    %947 = vmatpush.msra.mxu0 %v114
    %948 = vmatpush.msra.mxu0 %v110
    %949 = vmatpush.msra.mxu0 %v106
    %950 = vmatpush.msra.mxu0 %v102
    %951 = vmatpush.msra.mxu0 %v98
    %952 = vmatpush.msra.mxu0 %v94
    %953 = vmatpush.msra.mxu0 %v90
    %954 = vmatpush.msra.mxu0 %v86
    %955 = vmatpush.msra.mxu0 %v82
    %956 = vmatpush.msra.mxu0 %v78
    %957 = vmatpush.msra.mxu0 %v74
    %958 = vmatmul.f32.gmra.mxu0 %v941
    %v959 = vpop.f32.mrf.mxu0
    %v960 = vadd.f32 0.0, %v959
    %961 = vdwg.mxu0
    %962 = vmatpush.msra.mxu0 %v135
    %963 = vmatpush.msra.mxu0 %v131
    %964 = vmatpush.msra.mxu0 %v127
    %965 = vmatpush.msra.mxu0 %v123
    %966 = vmatpush.msra.mxu0 %v119
    %967 = vmatpush.msra.mxu0 %v115
    %968 = vmatpush.msra.mxu0 %v111
    %969 = vmatpush.msra.mxu0 %v107
    %970 = vmatpush.msra.mxu0 %v103
    %971 = vmatpush.msra.mxu0 %v99
    %972 = vmatpush.msra.mxu0 %v95
    %973 = vmatpush.msra.mxu0 %v91
    %974 = vmatpush.msra.mxu0 %v87
    %975 = vmatpush.msra.mxu0 %v83
    %976 = vmatpush.msra.mxu0 %v79
    %977 = vmatpush.msra.mxu0 %v75
    %978 = vmatmul.f32.gmra.mxu0 %v941
    %v979 = vpop.f32.mrf.mxu0
    %v980 = vadd.f32 0.0, %v979
    %981 = vdwg.mxu0
    %982 = vmatpush.msra.mxu0 %v136
    %983 = vmatpush.msra.mxu0 %v132
    %984 = vmatpush.msra.mxu0 %v128
    %985 = vmatpush.msra.mxu0 %v124
    %986 = vmatpush.msra.mxu0 %v120
    %987 = vmatpush.msra.mxu0 %v116
    %988 = vmatpush.msra.mxu0 %v112
    %989 = vmatpush.msra.mxu0 %v108
    %990 = vmatpush.msra.mxu0 %v104
    %991 = vmatpush.msra.mxu0 %v100
    %992 = vmatpush.msra.mxu0 %v96
    %993 = vmatpush.msra.mxu0 %v92
    %994 = vmatpush.msra.mxu0 %v88
    %995 = vmatpush.msra.mxu0 %v84
    %996 = vmatpush.msra.mxu0 %v80
    %997 = vmatpush.msra.mxu0 %v76
    %998 = vmatmul.f32.gmra.mxu0 %v941
    %v999 = vpop.f32.mrf.mxu0
    %v1000 = vadd.f32 0.0, %v999
    %1001 = vdwg.mxu0
    %1002 = vmatpush.msra.mxu0 %v137
    %1003 = vmatpush.msra.mxu0 %v133
    %1004 = vmatpush.msra.mxu0 %v129
    %1005 = vmatpush.msra.mxu0 %v125
    %1006 = vmatpush.msra.mxu0 %v121
    %1007 = vmatpush.msra.mxu0 %v117
    %1008 = vmatpush.msra.mxu0 %v113
    %1009 = vmatpush.msra.mxu0 %v109
    %1010 = vmatpush.msra.mxu0 %v105
    %1011 = vmatpush.msra.mxu0 %v101
    %1012 = vmatpush.msra.mxu0 %v97
    %1013 = vmatpush.msra.mxu0 %v93
    %1014 = vmatpush.msra.mxu0 %v89
    %1015 = vmatpush.msra.mxu0 %v85
    %1016 = vmatpush.msra.mxu0 %v81
    %1017 = vmatpush.msra.mxu0 %v77
    %1018 = vmatmul.f32.gmra.mxu0 %v941
    %v1019 = vpop.f32.mrf.mxu0
    %v1020 = vadd.f32 0.0, %v1019
    %1021 = vdwg.mxu0
    %v1022 = vtanh.pop %v960
    %v1023 = vtanh.pop %v980
    %v1024 = vtanh.pop %v1000
    %v1025 = vtanh.pop %v1020
    %v1026 = vmul.f32 %v1022, %v64
    %v1027 = vmul.f32 %v1023, %v65
    %v1028 = vmul.f32 %v1024, %v66
    %v1029 = vmul.f32 %v1025, %v67
    %v1030 = vadd.f32 %v1026, %v68
    %v1031 = vadd.f32 %v1027, %v69
    %v1032 = vadd.f32 %v1028, %v70
    %v1033 = vadd.f32 %v1029, %v71
    %v1034 = vmul.f32 %v1031, %v938
    %v1035 = vmul.f32 %v1030, %v1032
    %v1036 = vadd.f32 %v1034, %v1035
    %v1037 = vtanh.pop %v1036
    %v1038 = vmul.f32 %v1033, %v1037
    %v1039 = vadd.f32 %v1038, %v842
    %1040 = vmatpush.msra.mxu0 %v134
    %1041 = vmatpush.msra.mxu0 %v130
    %1042 = vmatpush.msra.mxu0 %v126
    %1043 = vmatpush.msra.mxu0 %v122
    %1044 = vmatpush.msra.mxu0 %v118
    %1045 = vmatpush.msra.mxu0 %v114
    %1046 = vmatpush.msra.mxu0 %v110
    %1047 = vmatpush.msra.mxu0 %v106
    %1048 = vmatpush.msra.mxu0 %v102
    %1049 = vmatpush.msra.mxu0 %v98
    %1050 = vmatpush.msra.mxu0 %v94
    %1051 = vmatpush.msra.mxu0 %v90
    %1052 = vmatpush.msra.mxu0 %v86
    %1053 = vmatpush.msra.mxu0 %v82
    %1054 = vmatpush.msra.mxu0 %v78
    %1055 = vmatpush.msra.mxu0 %v74
    %1056 = vmatmul.f32.gmra.mxu0 %v1039
    %v1057 = vpop.f32.mrf.mxu0
    %v1058 = vadd.f32 0.0, %v1057
    %1059 = vdwg.mxu0
    %1060 = vmatpush.msra.mxu0 %v135
    %1061 = vmatpush.msra.mxu0 %v131
    %1062 = vmatpush.msra.mxu0 %v127
    %1063 = vmatpush.msra.mxu0 %v123
    %1064 = vmatpush.msra.mxu0 %v119
    %1065 = vmatpush.msra.mxu0 %v115
    %1066 = vmatpush.msra.mxu0 %v111
    %1067 = vmatpush.msra.mxu0 %v107
    %1068 = vmatpush.msra.mxu0 %v103
    %1069 = vmatpush.msra.mxu0 %v99
    %1070 = vmatpush.msra.mxu0 %v95
    %1071 = vmatpush.msra.mxu0 %v91
    %1072 = vmatpush.msra.mxu0 %v87
    %1073 = vmatpush.msra.mxu0 %v83
    %1074 = vmatpush.msra.mxu0 %v79
    %1075 = vmatpush.msra.mxu0 %v75
    %1076 = vmatmul.f32.gmra.mxu0 %v1039
    %v1077 = vpop.f32.mrf.mxu0
    %v1078 = vadd.f32 0.0, %v1077
    %1079 = vdwg.mxu0
    %1080 = vmatpush.msra.mxu0 %v136
    %1081 = vmatpush.msra.mxu0 %v132
    %1082 = vmatpush.msra.mxu0 %v128
    %1083 = vmatpush.msra.mxu0 %v124
    %1084 = vmatpush.msra.mxu0 %v120
    %1085 = vmatpush.msra.mxu0 %v116
    %1086 = vmatpush.msra.mxu0 %v112
    %1087 = vmatpush.msra.mxu0 %v108
    %1088 = vmatpush.msra.mxu0 %v104
    %1089 = vmatpush.msra.mxu0 %v100
    %1090 = vmatpush.msra.mxu0 %v96
    %1091 = vmatpush.msra.mxu0 %v92
    %1092 = vmatpush.msra.mxu0 %v88
    %1093 = vmatpush.msra.mxu0 %v84
    %1094 = vmatpush.msra.mxu0 %v80
    %1095 = vmatpush.msra.mxu0 %v76
    %1096 = vmatmul.f32.gmra.mxu0 %v1039
    %v1097 = vpop.f32.mrf.mxu0
    %v1098 = vadd.f32 0.0, %v1097
    %1099 = vdwg.mxu0
    %1100 = vmatpush.msra.mxu0 %v137
    %1101 = vmatpush.msra.mxu0 %v133
    %1102 = vmatpush.msra.mxu0 %v129
    %1103 = vmatpush.msra.mxu0 %v125
    %1104 = vmatpush.msra.mxu0 %v121
    %1105 = vmatpush.msra.mxu0 %v117
    %1106 = vmatpush.msra.mxu0 %v113
    %1107 = vmatpush.msra.mxu0 %v109
    %1108 = vmatpush.msra.mxu0 %v105
    %1109 = vmatpush.msra.mxu0 %v101
    %1110 = vmatpush.msra.mxu0 %v97
    %1111 = vmatpush.msra.mxu0 %v93
    %1112 = vmatpush.msra.mxu0 %v89
    %1113 = vmatpush.msra.mxu0 %v85
    %1114 = vmatpush.msra.mxu0 %v81
    %1115 = vmatpush.msra.mxu0 %v77
    %1116 = vmatmul.f32.gmra.mxu0 %v1039
    %v1117 = vpop.f32.mrf.mxu0
    %v1118 = vadd.f32 0.0, %v1117
    %1119 = vdwg.mxu0
    %v1120 = vtanh.pop %v1058
    %v1121 = vtanh.pop %v1078
    %v1122 = vtanh.pop %v1098
    %v1123 = vtanh.pop %v1118
    %v1124 = vmul.f32 %v1120, %v64
    %v1125 = vmul.f32 %v1121, %v65
    %v1126 = vmul.f32 %v1122, %v66
    %v1127 = vmul.f32 %v1123, %v67
    %v1128 = vadd.f32 %v1124, %v68
    %v1129 = vadd.f32 %v1125, %v69
    %v1130 = vadd.f32 %v1126, %v70
    %v1131 = vadd.f32 %v1127, %v71
    %v1132 = vmul.f32 %v1129, %v1036
    %v1133 = vmul.f32 %v1128, %v1130
    %v1134 = vadd.f32 %v1132, %v1133
    %v1135 = vtanh.pop %v1134
    %v1136 = vmul.f32 %v1131, %v1135
    %v1137 = vld [vmem:[#allocation5] sm:$0xff]
    %v1138 = vld [vmem:[#allocation5 + $0x8] sm:$0xff]
    %v1139 = vld [vmem:[#allocation5 + $0x10] sm:$0xff]
    %v1140 = vld [vmem:[#allocation5 + $0x18] sm:$0xff]
    %v1141 = vld [vmem:[#allocation5 + $0x20] sm:$0xff]
    %v1142 = vld [vmem:[#allocation5 + $0x28] sm:$0xff]
    %v1143 = vld [vmem:[#allocation5 + $0x30] sm:$0xff]
    %v1144 = vld [vmem:[#allocation5 + $0x38] sm:$0xff]
    %v1145 = vld [vmem:[#allocation5 + $0x40] sm:$0xff]
    %v1146 = vld [vmem:[#allocation5 + $0x48] sm:$0xff]
    %v1147 = vld [vmem:[#allocation5 + $0x50] sm:$0xff]
    %v1148 = vld [vmem:[#allocation5 + $0x58] sm:$0xff]
    %v1149 = vld [vmem:[#allocation5 + $0x60] sm:$0xff]
    %v1150 = vld [vmem:[#allocation5 + $0x68] sm:$0xff]
    %v1151 = vld [vmem:[#allocation5 + $0x70] sm:$0xff]
    %v1152 = vld [vmem:[#allocation5 + $0x78] sm:$0xff]
    %v1153 = vld [vmem:[#allocation5 + $0x80] sm:$0x1]
    %v1154 = vperm.slane %v1153, 0
    %1155 = vmatpush.msra.mxu0 %v1152
    %1156 = vmatpush.msra.mxu0 %v1151
    %1157 = vmatpush.msra.mxu0 %v1150
    %1158 = vmatpush.msra.mxu0 %v1149
    %1159 = vmatpush.msra.mxu0 %v1148
    %1160 = vmatpush.msra.mxu0 %v1147
    %1161 = vmatpush.msra.mxu0 %v1146
    %1162 = vmatpush.msra.mxu0 %v1145
    %1163 = vmatpush.msra.mxu0 %v1144
    %1164 = vmatpush.msra.mxu0 %v1143
    %1165 = vmatpush.msra.mxu0 %v1142
    %1166 = vmatpush.msra.mxu0 %v1141
    %1167 = vmatpush.msra.mxu0 %v1140
    %1168 = vmatpush.msra.mxu0 %v1139
    %1169 = vmatpush.msra.mxu0 %v1138
    %1170 = vmatpush.msra.mxu0 %v1137
    %1171 = vmatmul.f32.gmra.mxu0 %v1136
    %v1172 = vpop.f32.mrf.mxu0
    %v1173 = vadd.f32 %v1154, %v1172
    %1174 = vdwg.mxu0
    %vm1175 = vcmask 9216
    %1176 = vst.msk [vmem:[#allocation7] sm:$0x3] %vm1175, %v1173
    // Predicated region
    $region22: #{_class_rnn_forward.1} parent=1 // pred_check
      _
    $region23: #{_class_rnn_forward.1} parent=1 // pred_check_branch
      %1178 = sbr.rel (0) target = $region25
    $region24: #{_class_rnn_forward.1} parent=1 // pred_region
      %1180 = vsyncadd [#allocation4], 0
      %s1182 = sshll.u32 [#allocation7], 4
      %s1183 = int_to_ptr.vmem [resolvable:$true] %s1182
      %s1184 = sshll.u32 %s3, 4
      %s1185 = int_to_ptr.hbm [resolvable:$true] %s1184
      %1187 = dma.vmem_to_hbm [thread:$0]  %s1183, 32, %s1185, [#allocation4]
    $region25: #{_class_rnn_forward.1} parent=1 // pred_fallthru
      _
    // Predicated region
    $region26: #{_class_rnn_forward.1} parent=1 // pred_check
      _
    $region27: #{_class_rnn_forward.1} parent=1 // pred_check_branch
      %1189 = sbr.rel (0) target = $region29
    $region28: #{_class_rnn_forward.1} parent=1 // pred_region
      %1191 = dma.done [#allocation4], 32
    $region29: #{_class_rnn_forward.1} parent=1 // pred_fallthru
      _
    %1192 = vsyncpa [#allocation3], 1
    %1193 = vsyncpa [#allocation6], 1
    %1194 = vsyncpa [#allocation4], 1

</llo_original>
